<compile_context>
chip_gen: v7x
topology: tpu7x:2x2x1
jax: 0.10.0
libtpu: 0.0.40
codegen_flags: <defaults>
</compile_context>

<pallas_src>
import math
import functools

import jax
import jax.numpy as jnp
from jax.experimental import pallas as pl
from jax.experimental.pallas import tpu as pltpu


def _cross_attention_kernel(x_ref, y_ref,
                            wq_ref, bq_ref,
                            wk_ref, bk_ref,
                            wv_ref, bv_ref,
                            wo_ref, bo_ref,
                            o_ref,
                            k_scr, v_scr,
                            *, n_heads, d_head, scale):
    """One grid step = one (TQ, D) query tile of one batch element."""
    qi = pl.program_id(1)
    cdt = x_ref.dtype                       # MXU operand dtype (bf16 or f32)

    # --- K / V projections: once per batch element, cached in VMEM scratch ---
    @pl.when(qi == 0)
    def _():
        y = y_ref[...]                                                 # (Skv, Dc)
        k = jnp.dot(y, wk_ref[...], preferred_element_type=jnp.float32) + bk_ref[...]
        v = jnp.dot(y, wv_ref[...], preferred_element_type=jnp.float32) + bv_ref[...]
        k_scr[...] = k.astype(k_scr.dtype)
        v_scr[...] = v.astype(v_scr.dtype)

    # --- Q projection for this tile; fold 1/sqrt(d_head) into q ---
    x = x_ref[...]                                                     # (TQ, D)
    q = jnp.dot(x, wq_ref[...], preferred_element_type=jnp.float32) + bq_ref[...]
    q = (q * scale).astype(cdt)                                        # (TQ, D)
    k = k_scr[...]                                                     # (Skv, D)
    v = v_scr[...]                                                     # (Skv, D)

    # --- per-head attention; out-projection fused per head (no transposes) ---
    acc = None
    for h in range(n_heads):
        lo, hi = h * d_head, (h + 1) * d_head
        qh = q[:, lo:hi]                                               # (TQ,  dh)
        kh = k[:, lo:hi]                                               # (Skv, dh)
        vh = v[:, lo:hi]                                               # (Skv, dh)

        # scores = qh @ kh.T (contraction on the last dim of both; no transpose)
        s = jax.lax.dot_general(qh, kh, (((1,), (1,)), ((), ())),
                                preferred_element_type=jnp.float32)    # (TQ, Skv) f32
        s = s - jnp.max(s, axis=-1, keepdims=True)
        p = jnp.exp(s)
        p = p * pl.reciprocal(jnp.sum(p, axis=-1, keepdims=True), approx=True)

        oh = jnp.dot(p.astype(cdt), vh,
                     preferred_element_type=jnp.float32)               # (TQ, dh) f32
        contrib = jnp.dot(oh.astype(cdt), wo_ref[lo:hi, :],
                          preferred_element_type=jnp.float32)          # (TQ, D) f32
        acc = contrib if acc is None else acc + contrib

    o_ref[...] = (acc + bo_ref[...]).astype(o_ref.dtype)


def _pick_q_tile(sq, target=256):
    """Largest q-tile <= target that divides Sq and keeps (8,128) alignment."""
    if sq <= target:
        return sq
    for tq in range(target, 7, -1):
        if sq % tq == 0 and tq % 8 == 0:
            return tq
    return sq   # no aligned divisor: fall back to the full sequence


def cross_attention(x, y, params, n_heads, *, q_tile=256):
    """x: (B, Sq, D), y: (B, Skv, Dc). params: PyTorch-layout weights W (out, in)
    and biases (out,). Pass bf16 x/y/params for the fast MXU path; softmax and
    all accumulation stay in f32 inside the kernel."""
    B, Sq, D = x.shape
    By, Skv, Dc = y.shape
    assert By == B
    assert D % n_heads == 0
    # Reference forward is only shape-consistent when d_cross == d_embed.
    assert Dc == D, "CrossAttention forward requires d_cross == d_embed"
    d_head = D // n_heads

    TQ = _pick_q_tile(Sq, q_tile)
    nqt = Sq // TQ

    # pre-transpose Linear weights to (in, out); biases to (1, out)
    wq = params['wq'].T
    wk = params['wk'].T
    wv = params['wv'].T
    wo = params['wo'].T
    bq = params['bq'][None, :]
    bk = params['bk'][None, :]
    bv = params['bv'][None, :]
    bo = params['bo'][None, :]

    kernel = functools.partial(_cross_attention_kernel,
                               n_heads=n_heads, d_head=d_head,
                               scale=1.0 / math.sqrt(d_head))

    const = lambda b, qi: (0, 0)
    itemsize = jnp.dtype(x.dtype).itemsize

    # Advisory cost estimate for the XLA scheduler.
    flops = 2 * B * (Sq * D * D + Skv * Dc * Dc + Skv * Dc * D
                     + 2 * Sq * Skv * D + Sq * D * D)
    transcendentals = B * n_heads * Sq * Skv
    bytes_accessed = itemsize * (2 * B * Sq * D + B * Skv * Dc
                                 + 2 * D * D + Dc * Dc + Dc * D + 4 * D)

    # VMEM budget: double-buffered activation tiles + resident weights +
    # K/V scratch + f32 temporaries, 2x headroom, capped under v7x's 64 MiB.
    est = itemsize * (4 * TQ * D + 2 * Skv * Dc
                      + 2 * D * D + Dc * Dc + Dc * D + 4 * D
                      + Skv * (Dc + D))
    est += 4 * (3 * TQ * D + 2 * TQ * Skv)
    vmem_limit = int(min(56 * 2**20, max(16 * 2**20, 2 * est)))

    return pl.pallas_call(
        kernel,
        out_shape=jax.ShapeDtypeStruct((B, Sq, D), x.dtype),
        grid=(B, nqt),
        in_specs=[
            pl.BlockSpec((pl.Squeezed(), TQ, D), lambda b, qi: (b, qi, 0)),    # x tile
            pl.BlockSpec((pl.Squeezed(), Skv, Dc), lambda b, qi: (b, 0, 0)),   # y (per batch)
            pl.BlockSpec((D, D), const),     # Wq^T  (constant index -> stays resident)
            pl.BlockSpec((1, D), const),     # bq
            pl.BlockSpec((Dc, Dc), const),   # Wk^T
            pl.BlockSpec((1, Dc), const),    # bk
            pl.BlockSpec((Dc, D), const),    # Wv^T
            pl.BlockSpec((1, D), const),     # bv
            pl.BlockSpec((D, D), const),     # Wo^T
            pl.BlockSpec((1, D), const),     # bo
        ],
        out_specs=pl.BlockSpec((pl.Squeezed(), TQ, D), lambda b, qi: (b, qi, 0)),
        scratch_shapes=[
            pltpu.VMEM((Skv, Dc), x.dtype),  # projected K (per batch element)
            pltpu.VMEM((Skv, D), x.dtype),   # projected V (per batch element)
        ],
        compiler_params=pltpu.CompilerParams(
            dimension_semantics=("parallel", "arbitrary"),
            vmem_limit_bytes=vmem_limit),
        cost_estimate=pl.CostEstimate(flops=flops,
                                      transcendentals=transcendentals,
                                      bytes_accessed=bytes_accessed),
    )(x, y, wq, bq, wk, bk, wv, bv, wo, bo)


def reference(x, y, params, n_heads):
    """Plain-JAX (f32) mirror of the PyTorch forward."""
    B, Sq, D = x.shape
    d_head = D // n_heads
    q = x @ params['wq'].T + params['bq']
    k = y @ params['wk'].T + params['bk']
    v = y @ params['wv'].T + params['bv']
    q = q.reshape(B, -1, n_heads, d_head).transpose(0, 2, 1, 3)
    k = k.reshape(B, -1, n_heads, d_head).transpose(0, 2, 1, 3)
    v = v.reshape(B, -1, n_heads, d_head).transpose(0, 2, 1, 3)
    w = (q @ k.transpose(0, 1, 3, 2)) / math.sqrt(d_head)
    w = jax.nn.softmax(w, axis=-1)
    o = (w @ v).transpose(0, 2, 1, 3).reshape(B, Sq, D)
    return o @ params['wo'].T + params['bo']


if __name__ == "__main__":
    # Small, deterministic config (d_cross == d_embed, see note at top).
    B, Sq, Skv = 2, 16, 8
    n_heads, d_embed = 4, 32
    d_cross = d_embed

    key = jax.random.PRNGKey(0)
    ks = jax.random.split(key, 10)

    def linear_init(kw, kb, out_f, in_f):
        bound = 1.0 / math.sqrt(in_f)
        w = jax.random.uniform(kw, (out_f, in_f), jnp.float32, -bound, bound)
        b = jax.random.uniform(kb, (out_f,), jnp.float32, -bound, bound)
        return w, b

    wq, bq = linear_init(ks[0], ks[1], d_embed, d_embed)   # q_proj
    wk, bk = linear_init(ks[2], ks[3], d_cross, d_cross)   # k_proj
    wv, bv = linear_init(ks[4], ks[5], d_embed, d_cross)   # v_proj
    wo, bo = linear_init(ks[6], ks[7], d_embed, d_embed)   # out_proj
    params = dict(wq=wq, bq=bq, wk=wk, bk=bk, wv=wv, bv=bv, wo=wo, bo=bo)

    x = jax.random.normal(ks[8], (B, Sq, d_embed), jnp.float32)
    y = jax.random.normal(ks[9], (B, Skv, d_cross), jnp.float32)

    ref = reference(x, y, params, n_heads)

    # f32 path (exact-ish; approx reciprocal is the only deviation)
    out_f32 = jax.block_until_ready(cross_attention(x, y, params, n_heads))
    assert out_f32.shape == (B, Sq, d_embed)
    assert jnp.allclose(out_f32, ref, atol=2e-2, rtol=2e-2), "f32 mismatch vs reference"

    # bf16 fast path (recommended MXU operand dtype; f32 accumulation inside)
    params_bf16 = {k_: v_.astype(jnp.bfloat16) for k_, v_ in params.items()}
    out_bf16 = jax.block_until_ready(
        cross_attention(x.astype(jnp.bfloat16), y.astype(jnp.bfloat16),
                        params_bf16, n_heads))
    assert out_bf16.dtype == jnp.bfloat16
    assert jnp.allclose(out_bf16.astype(jnp.float32), ref, atol=1e-1, rtol=1e-1), \
        "bf16 mismatch vs reference"

    print("KERNEL_OK")
</pallas_src>

<mosaic_0001>
module attributes {stable_mosaic.version = 11 : i64} {
  func.func @_cross_attention_kernel(%arg0: i32, %arg1: i32, %arg2: memref<1x16x32xf32, #tpu.memory_space<vmem>>, %arg3: memref<1x8x32xf32, #tpu.memory_space<vmem>>, %arg4: memref<32x32xf32, #tpu.memory_space<vmem>>, %arg5: memref<1x32xf32, #tpu.memory_space<vmem>>, %arg6: memref<32x32xf32, #tpu.memory_space<vmem>>, %arg7: memref<1x32xf32, #tpu.memory_space<vmem>>, %arg8: memref<32x32xf32, #tpu.memory_space<vmem>>, %arg9: memref<1x32xf32, #tpu.memory_space<vmem>>, %arg10: memref<32x32xf32, #tpu.memory_space<vmem>>, %arg11: memref<1x32xf32, #tpu.memory_space<vmem>>, %arg12: memref<1x16x32xf32, #tpu.memory_space<vmem>>, %arg13: memref<8x32xf32, #tpu.memory_space<vmem>>, %arg14: memref<8x32xf32, #tpu.memory_space<vmem>>) attributes {dimension_semantics = [#tpu.dimension_semantics<parallel>, #tpu.dimension_semantics<arbitrary>], iteration_bounds = array<i64: 2, 1>, scalar_prefetch = 0 : i64, scratch_operands = 2 : i64, tpu.core_type = #tpu.core_type<tc>, window_params = [{transform_indices = @transform_0, window_bounds = array<i64: 1, 16, 32>}, {transform_indices = @transform_1, window_bounds = array<i64: 1, 8, 32>}, {pipeline_mode = #tpu.pipeline_mode<synchronous>, transform_indices = @transform_2, window_bounds = array<i64: 32, 32>}, {pipeline_mode = #tpu.pipeline_mode<synchronous>, transform_indices = @transform_3, window_bounds = array<i64: 1, 32>}, {pipeline_mode = #tpu.pipeline_mode<synchronous>, transform_indices = @transform_4, window_bounds = array<i64: 32, 32>}, {pipeline_mode = #tpu.pipeline_mode<synchronous>, transform_indices = @transform_5, window_bounds = array<i64: 1, 32>}, {pipeline_mode = #tpu.pipeline_mode<synchronous>, transform_indices = @transform_6, window_bounds = array<i64: 32, 32>}, {pipeline_mode = #tpu.pipeline_mode<synchronous>, transform_indices = @transform_7, window_bounds = array<i64: 1, 32>}, {pipeline_mode = #tpu.pipeline_mode<synchronous>, transform_indices = @transform_8, window_bounds = array<i64: 32, 32>}, {pipeline_mode = #tpu.pipeline_mode<synchronous>, transform_indices = @transform_9, window_bounds = array<i64: 1, 32>}, {transform_indices = @transform_10, window_bounds = array<i64: 1, 16, 32>}]} {
    %c0_i32 = arith.constant 0 : i32
    %0 = arith.cmpi eq, %arg1, %c0_i32 : i32
    %1 = arith.extui %0 : i1 to i32
    %c0_i32_0 = arith.constant 0 : i32
    %2 = arith.cmpi ne, %1, %c0_i32_0 : i32
    scf.if %2 {
      %c0_42 = arith.constant 0 : index
      %c0_43 = arith.constant 0 : index
      %c0_44 = arith.constant 0 : index
      %91 = vector.load %arg3[%c0_42, %c0_43, %c0_44] : memref<1x8x32xf32, #tpu.memory_space<vmem>>, vector<1x8x32xf32>
      %92 = vector.shape_cast %91 : vector<1x8x32xf32> to vector<8x32xf32>
      %c0_45 = arith.constant 0 : index
      %c0_46 = arith.constant 0 : index
      %93 = vector.load %arg6[%c0_45, %c0_46] : memref<32x32xf32, #tpu.memory_space<vmem>>, vector<32x32xf32>
      %cst_47 = arith.constant dense<0.000000e+00> : vector<8x32xf32>
      %94 = tpu.matmul %92, %93, %cst_47 {dimension_numbers = #tpu.dot_dimension_numbers<[1], [0], [0], [1], [0, 0, 1, 1], [], []>} : vector<8x32xf32>, vector<32x32xf32>, vector<8x32xf32> -> vector<8x32xf32>
      %c0_48 = arith.constant 0 : index
      %c0_49 = arith.constant 0 : index
      %95 = vector.load %arg7[%c0_48, %c0_49] : memref<1x32xf32, #tpu.memory_space<vmem>>, vector<1x32xf32>
      %96 = vector.broadcast %95 : vector<1x32xf32> to vector<8x32xf32>
      %97 = arith.addf %94, %96 : vector<8x32xf32>
      %c0_50 = arith.constant 0 : index
      %c0_51 = arith.constant 0 : index
      %98 = vector.load %arg8[%c0_50, %c0_51] : memref<32x32xf32, #tpu.memory_space<vmem>>, vector<32x32xf32>
      %cst_52 = arith.constant dense<0.000000e+00> : vector<8x32xf32>
      %99 = tpu.matmul %92, %98, %cst_52 {dimension_numbers = #tpu.dot_dimension_numbers<[1], [0], [0], [1], [0, 0, 1, 1], [], []>} : vector<8x32xf32>, vector<32x32xf32>, vector<8x32xf32> -> vector<8x32xf32>
      %c0_53 = arith.constant 0 : index
      %c0_54 = arith.constant 0 : index
      %100 = vector.load %arg9[%c0_53, %c0_54] : memref<1x32xf32, #tpu.memory_space<vmem>>, vector<1x32xf32>
      %101 = vector.broadcast %100 : vector<1x32xf32> to vector<8x32xf32>
      %102 = arith.addf %99, %101 : vector<8x32xf32>
      %c0_55 = arith.constant 0 : index
      %c0_56 = arith.constant 0 : index
      %103 = vector.load %arg13[%c0_55, %c0_56] : memref<8x32xf32, #tpu.memory_space<vmem>>, vector<8x32xf32>
      tpu.vector_store %arg13[%c0_55, %c0_56], %97 {strides = array<i32>} : memref<8x32xf32, #tpu.memory_space<vmem>>, vector<8x32xf32>,
      %c0_57 = arith.constant 0 : index
      %c0_58 = arith.constant 0 : index
      %104 = vector.load %arg14[%c0_57, %c0_58] : memref<8x32xf32, #tpu.memory_space<vmem>>, vector<8x32xf32>
      tpu.vector_store %arg14[%c0_57, %c0_58], %102 {strides = array<i32>} : memref<8x32xf32, #tpu.memory_space<vmem>>, vector<8x32xf32>,
    } else {
    }
    %c0 = arith.constant 0 : index
    %c0_1 = arith.constant 0 : index
    %c0_2 = arith.constant 0 : index
    %3 = vector.load %arg2[%c0, %c0_1, %c0_2] : memref<1x16x32xf32, #tpu.memory_space<vmem>>, vector<1x16x32xf32>
    %4 = vector.shape_cast %3 : vector<1x16x32xf32> to vector<16x32xf32>
    %c0_3 = arith.constant 0 : index
    %c0_4 = arith.constant 0 : index
    %5 = vector.load %arg4[%c0_3, %c0_4] : memref<32x32xf32, #tpu.memory_space<vmem>>, vector<32x32xf32>
    %cst = arith.constant dense<0.000000e+00> : vector<16x32xf32>
    %6 = tpu.matmul %4, %5, %cst {dimension_numbers = #tpu.dot_dimension_numbers<[1], [0], [0], [1], [0, 0, 1, 1], [], []>} : vector<16x32xf32>, vector<32x32xf32>, vector<16x32xf32> -> vector<16x32xf32>
    %c0_5 = arith.constant 0 : index
    %c0_6 = arith.constant 0 : index
    %7 = vector.load %arg5[%c0_5, %c0_6] : memref<1x32xf32, #tpu.memory_space<vmem>>, vector<1x32xf32>
    %8 = vector.broadcast %7 : vector<1x32xf32> to vector<16x32xf32>
    %9 = arith.addf %6, %8 : vector<16x32xf32>
    %cst_7 = arith.constant 0.353553385 : f32
    %10 = vector.broadcast %cst_7 : f32 to vector<16x32xf32>
    %11 = arith.mulf %9, %10 : vector<16x32xf32>
    %c0_8 = arith.constant 0 : index
    %c0_9 = arith.constant 0 : index
    %12 = vector.load %arg13[%c0_8, %c0_9] : memref<8x32xf32, #tpu.memory_space<vmem>>, vector<8x32xf32>
    %c0_10 = arith.constant 0 : index
    %c0_11 = arith.constant 0 : index
    %13 = vector.load %arg14[%c0_10, %c0_11] : memref<8x32xf32, #tpu.memory_space<vmem>>, vector<8x32xf32>
    %14 = vector.extract_strided_slice %11 {offsets = [0, 0], sizes = [16, 8], strides = [1, 1]} : vector<16x32xf32> to vector<16x8xf32>
    %15 = vector.extract_strided_slice %12 {offsets = [0, 0], sizes = [8, 8], strides = [1, 1]} : vector<8x32xf32> to vector<8x8xf32>
    %16 = vector.extract_strided_slice %13 {offsets = [0, 0], sizes = [8, 8], strides = [1, 1]} : vector<8x32xf32> to vector<8x8xf32>
    %cst_12 = arith.constant dense<0.000000e+00> : vector<16x8xf32>
    %17 = tpu.matmul %14, %15, %cst_12 {dimension_numbers = #tpu.dot_dimension_numbers<[1], [1], [0], [0], [0, 0, 1, 0], [], []>} : vector<16x8xf32>, vector<8x8xf32>, vector<16x8xf32> -> vector<16x8xf32>
    %cst_13 = arith.constant dense<0xFF800000> : vector<16xf32>
    %18 = vector.multi_reduction <maximumf>, %17, %cst_13 [1] : vector<16x8xf32> to vector<16xf32>
    %19 = vector.shape_cast %18 : vector<16xf32> to vector<16x1xf32>
    %20 = vector.broadcast %19 : vector<16x1xf32> to vector<16x8xf32>
    %21 = arith.subf %17, %20 : vector<16x8xf32>
    %22 = math.exp %21 : vector<16x8xf32>
    %cst_14 = arith.constant dense<0.000000e+00> : vector<16xf32>
    %23 = vector.multi_reduction <add>, %22, %cst_14 [1] : vector<16x8xf32> to vector<16xf32>
    %24 = vector.shape_cast %23 : vector<16xf32> to vector<16x1xf32>
    %25 = tpu.reciprocal %24 {approx = true} : vector<16x1xf32> -> vector<16x1xf32>
    %26 = vector.broadcast %25 : vector<16x1xf32> to vector<16x8xf32>
    %27 = arith.mulf %22, %26 : vector<16x8xf32>
    %cst_15 = arith.constant dense<0.000000e+00> : vector<16x8xf32>
    %28 = tpu.matmul %27, %16, %cst_15 {dimension_numbers = #tpu.dot_dimension_numbers<[1], [0], [0], [1], [0, 0, 1, 1], [], []>} : vector<16x8xf32>, vector<8x8xf32>, vector<16x8xf32> -> vector<16x8xf32>
    %c0_16 = arith.constant 0 : index
    %c0_17 = arith.constant 0 : index
    %29 = vector.load %arg10[%c0_16, %c0_17] : memref<32x32xf32, #tpu.memory_space<vmem>>, vector<8x32xf32>
    %cst_18 = arith.constant dense<0.000000e+00> : vector<16x32xf32>
    %30 = tpu.matmul %28, %29, %cst_18 {dimension_numbers = #tpu.dot_dimension_numbers<[1], [0], [0], [1], [0, 0, 1, 1], [], []>} : vector<16x8xf32>, vector<8x32xf32>, vector<16x32xf32> -> vector<16x32xf32>
    %31 = vector.extract_strided_slice %11 {offsets = [0, 8], sizes = [16, 8], strides = [1, 1]} : vector<16x32xf32> to vector<16x8xf32>
    %32 = vector.extract_strided_slice %12 {offsets = [0, 8], sizes = [8, 8], strides = [1, 1]} : vector<8x32xf32> to vector<8x8xf32>
    %33 = vector.extract_strided_slice %13 {offsets = [0, 8], sizes = [8, 8], strides = [1, 1]} : vector<8x32xf32> to vector<8x8xf32>
    %cst_19 = arith.constant dense<0.000000e+00> : vector<16x8xf32>
    %34 = tpu.matmul %31, %32, %cst_19 {dimension_numbers = #tpu.dot_dimension_numbers<[1], [1], [0], [0], [0, 0, 1, 0], [], []>} : vector<16x8xf32>, vector<8x8xf32>, vector<16x8xf32> -> vector<16x8xf32>
    %cst_20 = arith.constant dense<0xFF800000> : vector<16xf32>
    %35 = vector.multi_reduction <maximumf>, %34, %cst_20 [1] : vector<16x8xf32> to vector<16xf32>
    %36 = vector.shape_cast %35 : vector<16xf32> to vector<16x1xf32>
    %37 = vector.broadcast %36 : vector<16x1xf32> to vector<16x8xf32>
    %38 = arith.subf %34, %37 : vector<16x8xf32>
    %39 = math.exp %38 : vector<16x8xf32>
    %cst_21 = arith.constant dense<0.000000e+00> : vector<16xf32>
    %40 = vector.multi_reduction <add>, %39, %cst_21 [1] : vector<16x8xf32> to vector<16xf32>
    %41 = vector.shape_cast %40 : vector<16xf32> to vector<16x1xf32>
    %42 = tpu.reciprocal %41 {approx = true} : vector<16x1xf32> -> vector<16x1xf32>
    %43 = vector.broadcast %42 : vector<16x1xf32> to vector<16x8xf32>
    %44 = arith.mulf %39, %43 : vector<16x8xf32>
    %cst_22 = arith.constant dense<0.000000e+00> : vector<16x8xf32>
    %45 = tpu.matmul %44, %33, %cst_22 {dimension_numbers = #tpu.dot_dimension_numbers<[1], [0], [0], [1], [0, 0, 1, 1], [], []>} : vector<16x8xf32>, vector<8x8xf32>, vector<16x8xf32> -> vector<16x8xf32>
    %c8 = arith.constant 8 : index
    %c0_23 = arith.constant 0 : index
    %46 = vector.load %arg10[%c8, %c0_23] : memref<32x32xf32, #tpu.memory_space<vmem>>, vector<8x32xf32>
    %cst_24 = arith.constant dense<0.000000e+00> : vector<16x32xf32>
    %47 = tpu.matmul %45, %46, %cst_24 {dimension_numbers = #tpu.dot_dimension_numbers<[1], [0], [0], [1], [0, 0, 1, 1], [], []>} : vector<16x8xf32>, vector<8x32xf32>, vector<16x32xf32> -> vector<16x32xf32>
    %48 = arith.addf %30, %47 : vector<16x32xf32>
    %49 = vector.extract_strided_slice %11 {offsets = [0, 16], sizes = [16, 8], strides = [1, 1]} : vector<16x32xf32> to vector<16x8xf32>
    %50 = vector.extract_strided_slice %12 {offsets = [0, 16], sizes = [8, 8], strides = [1, 1]} : vector<8x32xf32> to vector<8x8xf32>
    %51 = vector.extract_strided_slice %13 {offsets = [0, 16], sizes = [8, 8], strides = [1, 1]} : vector<8x32xf32> to vector<8x8xf32>
    %cst_25 = arith.constant dense<0.000000e+00> : vector<16x8xf32>
    %52 = tpu.matmul %49, %50, %cst_25 {dimension_numbers = #tpu.dot_dimension_numbers<[1], [1], [0], [0], [0, 0, 1, 0], [], []>} : vector<16x8xf32>, vector<8x8xf32>, vector<16x8xf32> -> vector<16x8xf32>
    %cst_26 = arith.constant dense<0xFF800000> : vector<16xf32>
    %53 = vector.multi_reduction <maximumf>, %52, %cst_26 [1] : vector<16x8xf32> to vector<16xf32>
    %54 = vector.shape_cast %53 : vector<16xf32> to vector<16x1xf32>
    %55 = vector.broadcast %54 : vector<16x1xf32> to vector<16x8xf32>
    %56 = arith.subf %52, %55 : vector<16x8xf32>
    %57 = math.exp %56 : vector<16x8xf32>
    %cst_27 = arith.constant dense<0.000000e+00> : vector<16xf32>
    %58 = vector.multi_reduction <add>, %57, %cst_27 [1] : vector<16x8xf32> to vector<16xf32>
    %59 = vector.shape_cast %58 : vector<16xf32> to vector<16x1xf32>
    %60 = tpu.reciprocal %59 {approx = true} : vector<16x1xf32> -> vector<16x1xf32>
    %61 = vector.broadcast %60 : vector<16x1xf32> to vector<16x8xf32>
    %62 = arith.mulf %57, %61 : vector<16x8xf32>
    %cst_28 = arith.constant dense<0.000000e+00> : vector<16x8xf32>
    %63 = tpu.matmul %62, %51, %cst_28 {dimension_numbers = #tpu.dot_dimension_numbers<[1], [0], [0], [1], [0, 0, 1, 1], [], []>} : vector<16x8xf32>, vector<8x8xf32>, vector<16x8xf32> -> vector<16x8xf32>
    %c16 = arith.constant 16 : index
    %c0_29 = arith.constant 0 : index
    %64 = vector.load %arg10[%c16, %c0_29] : memref<32x32xf32, #tpu.memory_space<vmem>>, vector<8x32xf32>
    %cst_30 = arith.constant dense<0.000000e+00> : vector<16x32xf32>
    %65 = tpu.matmul %63, %64, %cst_30 {dimension_numbers = #tpu.dot_dimension_numbers<[1], [0], [0], [1], [0, 0, 1, 1], [], []>} : vector<16x8xf32>, vector<8x32xf32>, vector<16x32xf32> -> vector<16x32xf32>
    %66 = arith.addf %48, %65 : vector<16x32xf32>
    %67 = vector.extract_strided_slice %11 {offsets = [0, 24], sizes = [16, 8], strides = [1, 1]} : vector<16x32xf32> to vector<16x8xf32>
    %68 = vector.extract_strided_slice %12 {offsets = [0, 24], sizes = [8, 8], strides = [1, 1]} : vector<8x32xf32> to vector<8x8xf32>
    %69 = vector.extract_strided_slice %13 {offsets = [0, 24], sizes = [8, 8], strides = [1, 1]} : vector<8x32xf32> to vector<8x8xf32>
    %cst_31 = arith.constant dense<0.000000e+00> : vector<16x8xf32>
    %70 = tpu.matmul %67, %68, %cst_31 {dimension_numbers = #tpu.dot_dimension_numbers<[1], [1], [0], [0], [0, 0, 1, 0], [], []>} : vector<16x8xf32>, vector<8x8xf32>, vector<16x8xf32> -> vector<16x8xf32>
    %cst_32 = arith.constant dense<0xFF800000> : vector<16xf32>
    %71 = vector.multi_reduction <maximumf>, %70, %cst_32 [1] : vector<16x8xf32> to vector<16xf32>
    %72 = vector.shape_cast %71 : vector<16xf32> to vector<16x1xf32>
    %73 = vector.broadcast %72 : vector<16x1xf32> to vector<16x8xf32>
    %74 = arith.subf %70, %73 : vector<16x8xf32>
    %75 = math.exp %74 : vector<16x8xf32>
    %cst_33 = arith.constant dense<0.000000e+00> : vector<16xf32>
    %76 = vector.multi_reduction <add>, %75, %cst_33 [1] : vector<16x8xf32> to vector<16xf32>
    %77 = vector.shape_cast %76 : vector<16xf32> to vector<16x1xf32>
    %78 = tpu.reciprocal %77 {approx = true} : vector<16x1xf32> -> vector<16x1xf32>
    %79 = vector.broadcast %78 : vector<16x1xf32> to vector<16x8xf32>
    %80 = arith.mulf %75, %79 : vector<16x8xf32>
    %cst_34 = arith.constant dense<0.000000e+00> : vector<16x8xf32>
    %81 = tpu.matmul %80, %69, %cst_34 {dimension_numbers = #tpu.dot_dimension_numbers<[1], [0], [0], [1], [0, 0, 1, 1], [], []>} : vector<16x8xf32>, vector<8x8xf32>, vector<16x8xf32> -> vector<16x8xf32>
    %c24 = arith.constant 24 : index
    %c0_35 = arith.constant 0 : index
    %82 = vector.load %arg10[%c24, %c0_35] : memref<32x32xf32, #tpu.memory_space<vmem>>, vector<8x32xf32>
    %cst_36 = arith.constant dense<0.000000e+00> : vector<16x32xf32>
    %83 = tpu.matmul %81, %82, %cst_36 {dimension_numbers = #tpu.dot_dimension_numbers<[1], [0], [0], [1], [0, 0, 1, 1], [], []>} : vector<16x8xf32>, vector<8x32xf32>, vector<16x32xf32> -> vector<16x32xf32>
    %84 = arith.addf %66, %83 : vector<16x32xf32>
    %c0_37 = arith.constant 0 : index
    %c0_38 = arith.constant 0 : index
    %85 = vector.load %arg11[%c0_37, %c0_38] : memref<1x32xf32, #tpu.memory_space<vmem>>, vector<1x32xf32>
    %86 = vector.broadcast %85 : vector<1x32xf32> to vector<16x32xf32>
    %87 = arith.addf %84, %86 : vector<16x32xf32>
    %c0_39 = arith.constant 0 : index
    %c0_40 = arith.constant 0 : index
    %c0_41 = arith.constant 0 : index
    %88 = vector.load %arg12[%c0_39, %c0_40, %c0_41] : memref<1x16x32xf32, #tpu.memory_space<vmem>>, vector<1x16x32xf32>
    %89 = vector.shape_cast %88 : vector<1x16x32xf32> to vector<16x32xf32>
    %90 = vector.shape_cast %87 : vector<16x32xf32> to vector<1x16x32xf32>
    tpu.vector_store %arg12[%c0_39, %c0_40, %c0_41], %90 {strides = array<i32>} : memref<1x16x32xf32, #tpu.memory_space<vmem>>, vector<1x16x32xf32>,
    return
  }
  func.func @transform_0(%arg0: i32, %arg1: i32) -> (i32, i32, i32) {
    %c0_i32 = arith.constant 0 : i32
    %c0_i32_0 = arith.constant 0 : i32
    return %arg0, %arg1, %c0_i32 : i32, i32, i32
  }
  func.func @transform_1(%arg0: i32, %arg1: i32) -> (i32, i32, i32) {
    %c0_i32 = arith.constant 0 : i32
    %c0_i32_0 = arith.constant 0 : i32
    %c0_i32_1 = arith.constant 0 : i32
    return %arg0, %c0_i32, %c0_i32_0 : i32, i32, i32
  }
  func.func @transform_2(%arg0: i32, %arg1: i32) -> (i32, i32) {
    %c0_i32 = arith.constant 0 : i32
    %c0_i32_0 = arith.constant 0 : i32
    %c0_i32_1 = arith.constant 0 : i32
    return %c0_i32, %c0_i32_0 : i32, i32
  }
  func.func @transform_3(%arg0: i32, %arg1: i32) -> (i32, i32) {
    %c0_i32 = arith.constant 0 : i32
    %c0_i32_0 = arith.constant 0 : i32
    %c0_i32_1 = arith.constant 0 : i32
    return %c0_i32, %c0_i32_0 : i32, i32
  }
  func.func @transform_4(%arg0: i32, %arg1: i32) -> (i32, i32) {
    %c0_i32 = arith.constant 0 : i32
    %c0_i32_0 = arith.constant 0 : i32
    %c0_i32_1 = arith.constant 0 : i32
    return %c0_i32, %c0_i32_0 : i32, i32
  }
  func.func @transform_5(%arg0: i32, %arg1: i32) -> (i32, i32) {
    %c0_i32 = arith.constant 0 : i32
    %c0_i32_0 = arith.constant 0 : i32
    %c0_i32_1 = arith.constant 0 : i32
    return %c0_i32, %c0_i32_0 : i32, i32
  }
  func.func @transform_6(%arg0: i32, %arg1: i32) -> (i32, i32) {
    %c0_i32 = arith.constant 0 : i32
    %c0_i32_0 = arith.constant 0 : i32
    %c0_i32_1 = arith.constant 0 : i32
    return %c0_i32, %c0_i32_0 : i32, i32
  }
  func.func @transform_7(%arg0: i32, %arg1: i32) -> (i32, i32) {
    %c0_i32 = arith.constant 0 : i32
    %c0_i32_0 = arith.constant 0 : i32
    %c0_i32_1 = arith.constant 0 : i32
    return %c0_i32, %c0_i32_0 : i32, i32
  }
  func.func @transform_8(%arg0: i32, %arg1: i32) -> (i32, i32) {
    %c0_i32 = arith.constant 0 : i32
    %c0_i32_0 = arith.constant 0 : i32
    %c0_i32_1 = arith.constant 0 : i32
    return %c0_i32, %c0_i32_0 : i32, i32
  }
  func.func @transform_9(%arg0: i32, %arg1: i32) -> (i32, i32) {
    %c0_i32 = arith.constant 0 : i32
    %c0_i32_0 = arith.constant 0 : i32
    %c0_i32_1 = arith.constant 0 : i32
    return %c0_i32, %c0_i32_0 : i32, i32
  }
  func.func @transform_10(%arg0: i32, %arg1: i32) -> (i32, i32, i32) {
    %c0_i32 = arith.constant 0 : i32
    %c0_i32_0 = arith.constant 0 : i32
    return %arg0, %arg1, %c0_i32 : i32, i32, i32
  }
}

</mosaic_0001>

<llo_original>
// kernel: tpu_custom_call.1
$region0: #{tpu_custom_call.1}
  #allocation0 [shape = 'u32[]', space=smem, size = 0x4, offset = 0x4, fixed_abs, tag = 'smem constant byte address 0x4 - core index']
  #allocation1 [shape = 'u32[144,128]{1,0:T(1,128)}', space=vmem, size = 0x12000, scoped, tag = 'internal scratch']
  #allocation2 [shape = 'f32[8,32]{1,0:T(8,128)}', space=vmem, size = 0x1000, scoped, tag = 'scratch operand']
  #allocation3 [shape = 'f32[8,32]{1,0:T(8,128)}', space=vmem, size = 0x1000, scoped, tag = 'scratch operand']
  %s0 = inlined_call_operand.hbm [shape: f32[2,16,32], index: 0, kind: input, shape index: {}]
  %s1 = inlined_call_operand.hbm [shape: f32[2,8,32], index: 1, kind: input, shape index: {}]
  %s2 = inlined_call_operand.hbm [shape: f32[32,32], index: 2, kind: input, shape index: {}]
  %s3 = inlined_call_operand.vmem [shape: f32[1,32], index: 3, kind: input, shape index: {}]
  %s4 = inlined_call_operand.hbm [shape: f32[32,32], index: 4, kind: input, shape index: {}]
  %s5 = inlined_call_operand.vmem [shape: f32[1,32], index: 5, kind: input, shape index: {}]
  %s6 = inlined_call_operand.hbm [shape: f32[32,32], index: 6, kind: input, shape index: {}]
  %s7 = inlined_call_operand.vmem [shape: f32[1,32], index: 7, kind: input, shape index: {}]
  %s8 = inlined_call_operand.hbm [shape: f32[32,32], index: 8, kind: input, shape index: {}]
  %s9 = inlined_call_operand.vmem [shape: f32[1,32], index: 9, kind: input, shape index: {}]
  %s10 = inlined_call_operand.hbm [shape: f32[2,16,32], index: 10, kind: output, shape index: {}]
  %s11 = sld [smem:[#allocation0]]
  $region101: #{tpu_custom_call.1} parent=0
    _
  %s13 = ssub.s32 1, %s11
  %s14 = scalar_select 0, %s13, %s11
  $region1: #{tpu_custom_call.1} parent=0
    #allocation4 [shape = 'u8[16384]{0}', space=vmem, size = 0x4000, scoped, tag = 'input window, operand 0']
    #allocation5 [shape = 's32[2]{0}', space=sflag, size = 0x8, scoped, tag = 'scoped memory for tpu_custom_call.1']
    #allocation6 [shape = 's32[2]{0}', space=sflag, size = 0x8, scoped, tag = 'scoped memory for tpu_custom_call.1']
    #allocation7 [shape = 'u8[8192]{0}', space=vmem, size = 0x2000, scoped, tag = 'input window, operand 1']
    #allocation8 [shape = 's32[2]{0}', space=sflag, size = 0x8, scoped, tag = 'scoped memory for tpu_custom_call.1']
    #allocation9 [shape = 'u8[16384]{0}', space=vmem, size = 0x4000, scoped, tag = 'input window, operand 2, single buffered']
    #allocation10 [shape = 'u8[16384]{0}', space=vmem, size = 0x4000, scoped, tag = 'input window, operand 4, single buffered']
    #allocation11 [shape = 's32[1]{0}', space=sflag, size = 0x4, scoped, tag = 'scoped memory for tpu_custom_call.1']
    #allocation12 [shape = 'u8[16384]{0}', space=vmem, size = 0x4000, scoped, tag = 'input window, operand 6, single buffered']
    #allocation13 [shape = 'u8[16384]{0}', space=vmem, size = 0x4000, scoped, tag = 'input window, operand 8, single buffered']
    #allocation14 [shape = 's32[1]{0}', space=sflag, size = 0x4, scoped, tag = 'scoped memory for tpu_custom_call.1']
    #allocation15 [shape = 'u8[16384]{0}', space=vmem, size = 0x4000, scoped, tag = 'output window, operand 0']
    %15 = vsyncpa [#allocation5], 0
    %s16 = scalar_lea.sflag [#allocation5], 1
    %17 = vsyncpa %s16, 0
    %18 = vsyncpa [#allocation8], 0
    %s19 = scalar_lea.sflag [#allocation8], 1
    %20 = vsyncpa %s19, 0
    %21 = vsyncpa [#allocation11], 0
    %22 = vsyncpa [#allocation14], 0
    %23 = vsyncpa [#allocation6], 0
    %s24 = scalar_lea.sflag [#allocation6], 1
    %25 = vsyncpa %s24, 0
    loop: start=0, step=1, limit=4
    $region2: #{tpu_custom_call.1} parent=1 // loop_pre_header
      _
    $region3: #{tpu_custom_call.1} parent=1 // loop_header
      %s27 = sphi 0, %s31
      %p28 = scmp.ge.s32.totalorder %s27, 4
      %s34 = sphi 0, %s46
      %s35 = sphi 0, %s42
      %s36 = sphi 0, %s34
      %s37 = sphi 0, %s35
      %s38 = sphi 0, %s36
      %s39 = sphi 0, %s37
      %s51 = sphi 0, %s53
      %s54 = sphi 0, %s51
      %s55 = sphi 0, %s54
      %s71 = sphi 0, %s55
      %s77 = sphi 0, %s79
      %s80 = sphi 0, %s77
      %s81 = sphi 0, %s80
      %s97 = sphi 0, %s81
      %s101 = sphi 0, %s101
      %s103 = sphi 0, %s101
      %s104 = sphi 0, %s103
      %s118 = sphi 0, %s104
      %s122 = sphi 0, %s122
      %s124 = sphi 0, %s122
      %s125 = sphi 0, %s124
      %s139 = sphi 0, %s125
      %s143 = sphi 0, %s143
      %s145 = sphi 0, %s143
      %s146 = sphi 0, %s145
      %s160 = sphi 0, %s146
      %s164 = sphi 0, %s164
      %s166 = sphi 0, %s164
      %s167 = sphi 0, %s166
      %s181 = sphi 0, %s167
      %s185 = sphi 0, %s185
      %s187 = sphi 0, %s185
      %s188 = sphi 0, %s187
      %s202 = sphi 0, %s188
      %s206 = sphi 0, %s206
      %s208 = sphi 0, %s206
      %s209 = sphi 0, %s208
      %s223 = sphi 0, %s209
      %s227 = sphi 0, %s227
      %s229 = sphi 0, %s227
      %s230 = sphi 0, %s229
      %s244 = sphi 0, %s230
      %s248 = sphi 0, %s248
      %s250 = sphi 0, %s248
      %s251 = sphi 0, %s250
      %s265 = sphi 0, %s251
      %s273 = sphi 0, %s275
      %s276 = sphi 0, %s273
      %s277 = sphi 0, %s276
      %s293 = sphi 0, %s277
    $region4: #{tpu_custom_call.1} parent=1 // loop_header_branch
      %30 = sbr.rel (%p28) target = $region8
    $region5: #{tpu_custom_call.1} parent=1 // loop_body
      %s32 = ssub.s32 %s27, 1
      %s33 = ssub.s32 %s27, 2
      %s40 = sadd.s32 1, %s35
      %p41 = scmp.ge.s32.totalorder %s40, 1
      %s42 = scalar_select %p41, 0, %s40
      %s43 = sadd.s32 1, %s34
      %s44 = scalar_select %p41, %s43, %s34
      %p45 = scmp.ge.s32.totalorder %s44, 2
      %s46 = scalar_select %p45, 0, %s44
      %s47 = ssub.s32 %s34, %s46
      %s48 = ssub.s32 %s35, %s42
      %s49 = sor.u32 %s47, %s48
      %p50 = scmp.eq.s32.totalorder %s49, 0
      %s52 = sadd.s32 %s51, 1
      %s53 = scalar_select %p50, %s51, %s52
      %p56 = pneg %p50
      %p57 = scmp.eq.s32.totalorder %s27, 1
      %p58 = por %p56, %p57
      %p59 = scmp.ne.s32.totalorder %s51, %s54
      %p60 = scmp.eq.s32.totalorder %s27, 0
      %p61 = por %p59, %p60
      %p62 = scmp.ne.s32.totalorder %s51, %s54
      %p63 = scmp.eq.s32.totalorder %s32, 1
      %p64 = por %p62, %p63
      %p65 = scmp.ne.s32.totalorder %s54, %s55
      %p66 = scmp.eq.s32.totalorder %s32, 0
      %p67 = por %p65, %p66
      %p68 = scmp.ne.s32.totalorder %s54, %s55
      %p69 = scmp.eq.s32.totalorder %s33, 1
      %p70 = por %p68, %p69
      %p72 = scmp.ne.s32.totalorder %s55, %s71
      %p73 = scmp.eq.s32.totalorder %s33, 0
      %p74 = por %p72, %p73
      %s75 = ssub.s32 %s34, %s46
      %p76 = scmp.eq.s32.totalorder %s75, 0
      %s78 = sadd.s32 %s77, 1
      %s79 = scalar_select %p76, %s77, %s78
      %p82 = pneg %p76
      %p83 = scmp.eq.s32.totalorder %s27, 1
      %p84 = por %p82, %p83
      %p85 = scmp.ne.s32.totalorder %s77, %s80
      %p86 = scmp.eq.s32.totalorder %s27, 0
      %p87 = por %p85, %p86
      %p88 = scmp.ne.s32.totalorder %s77, %s80
      %p89 = scmp.eq.s32.totalorder %s32, 1
      %p90 = por %p88, %p89
      %p91 = scmp.ne.s32.totalorder %s80, %s81
      %p92 = scmp.eq.s32.totalorder %s32, 0
      %p93 = por %p91, %p92
      %p94 = scmp.ne.s32.totalorder %s80, %s81
      %p95 = scmp.eq.s32.totalorder %s33, 1
      %p96 = por %p94, %p95
      %p98 = scmp.ne.s32.totalorder %s81, %s97
      %p99 = scmp.eq.s32.totalorder %s33, 0
      %p100 = por %p98, %p99
      %s102 = sadd.s32 %s101, 1
      %p105 = scmp.eq.s32.totalorder %s27, 1
      %p106 = scmp.ne.s32.totalorder %s101, %s103
      %p107 = scmp.eq.s32.totalorder %s27, 0
      %p108 = por %p106, %p107
      %p109 = scmp.ne.s32.totalorder %s101, %s103
      %p110 = scmp.eq.s32.totalorder %s32, 1
      %p111 = por %p109, %p110
      %p112 = scmp.ne.s32.totalorder %s103, %s104
      %p113 = scmp.eq.s32.totalorder %s32, 0
      %p114 = por %p112, %p113
      %p115 = scmp.ne.s32.totalorder %s103, %s104
      %p116 = scmp.eq.s32.totalorder %s33, 1
      %p117 = por %p115, %p116
      %p119 = scmp.ne.s32.totalorder %s104, %s118
      %p120 = scmp.eq.s32.totalorder %s33, 0
      %p121 = por %p119, %p120
      %s123 = sadd.s32 %s122, 1
      %p126 = scmp.eq.s32.totalorder %s27, 1
      %p127 = scmp.ne.s32.totalorder %s122, %s124
      %p128 = scmp.eq.s32.totalorder %s27, 0
      %p129 = por %p127, %p128
      %p130 = scmp.ne.s32.totalorder %s122, %s124
      %p131 = scmp.eq.s32.totalorder %s32, 1
      %p132 = por %p130, %p131
      %p133 = scmp.ne.s32.totalorder %s124, %s125
      %p134 = scmp.eq.s32.totalorder %s32, 0
      %p135 = por %p133, %p134
      %p136 = scmp.ne.s32.totalorder %s124, %s125
      %p137 = scmp.eq.s32.totalorder %s33, 1
      %p138 = por %p136, %p137
      %p140 = scmp.ne.s32.totalorder %s125, %s139
      %p141 = scmp.eq.s32.totalorder %s33, 0
      %p142 = por %p140, %p141
      %s144 = sadd.s32 %s143, 1
      %p147 = scmp.eq.s32.totalorder %s27, 1
      %p148 = scmp.ne.s32.totalorder %s143, %s145
      %p149 = scmp.eq.s32.totalorder %s27, 0
      %p150 = por %p148, %p149
      %p151 = scmp.ne.s32.totalorder %s143, %s145
      %p152 = scmp.eq.s32.totalorder %s32, 1
      %p153 = por %p151, %p152
      %p154 = scmp.ne.s32.totalorder %s145, %s146
      %p155 = scmp.eq.s32.totalorder %s32, 0
      %p156 = por %p154, %p155
      %p157 = scmp.ne.s32.totalorder %s145, %s146
      %p158 = scmp.eq.s32.totalorder %s33, 1
      %p159 = por %p157, %p158
      %p161 = scmp.ne.s32.totalorder %s146, %s160
      %p162 = scmp.eq.s32.totalorder %s33, 0
      %p163 = por %p161, %p162
      %s165 = sadd.s32 %s164, 1
      %p168 = scmp.eq.s32.totalorder %s27, 1
      %p169 = scmp.ne.s32.totalorder %s164, %s166
      %p170 = scmp.eq.s32.totalorder %s27, 0
      %p171 = por %p169, %p170
      %p172 = scmp.ne.s32.totalorder %s164, %s166
      %p173 = scmp.eq.s32.totalorder %s32, 1
      %p174 = por %p172, %p173
      %p175 = scmp.ne.s32.totalorder %s166, %s167
      %p176 = scmp.eq.s32.totalorder %s32, 0
      %p177 = por %p175, %p176
      %p178 = scmp.ne.s32.totalorder %s166, %s167
      %p179 = scmp.eq.s32.totalorder %s33, 1
      %p180 = por %p178, %p179
      %p182 = scmp.ne.s32.totalorder %s167, %s181
      %p183 = scmp.eq.s32.totalorder %s33, 0
      %p184 = por %p182, %p183
      %s186 = sadd.s32 %s185, 1
      %p189 = scmp.eq.s32.totalorder %s27, 1
      %p190 = scmp.ne.s32.totalorder %s185, %s187
      %p191 = scmp.eq.s32.totalorder %s27, 0
      %p192 = por %p190, %p191
      %p193 = scmp.ne.s32.totalorder %s185, %s187
      %p194 = scmp.eq.s32.totalorder %s32, 1
      %p195 = por %p193, %p194
      %p196 = scmp.ne.s32.totalorder %s187, %s188
      %p197 = scmp.eq.s32.totalorder %s32, 0
      %p198 = por %p196, %p197
      %p199 = scmp.ne.s32.totalorder %s187, %s188
      %p200 = scmp.eq.s32.totalorder %s33, 1
      %p201 = por %p199, %p200
      %p203 = scmp.ne.s32.totalorder %s188, %s202
      %p204 = scmp.eq.s32.totalorder %s33, 0
      %p205 = por %p203, %p204
      %s207 = sadd.s32 %s206, 1
      %p210 = scmp.eq.s32.totalorder %s27, 1
      %p211 = scmp.ne.s32.totalorder %s206, %s208
      %p212 = scmp.eq.s32.totalorder %s27, 0
      %p213 = por %p211, %p212
      %p214 = scmp.ne.s32.totalorder %s206, %s208
      %p215 = scmp.eq.s32.totalorder %s32, 1
      %p216 = por %p214, %p215
      %p217 = scmp.ne.s32.totalorder %s208, %s209
      %p218 = scmp.eq.s32.totalorder %s32, 0
      %p219 = por %p217, %p218
      %p220 = scmp.ne.s32.totalorder %s208, %s209
      %p221 = scmp.eq.s32.totalorder %s33, 1
      %p222 = por %p220, %p221
      %p224 = scmp.ne.s32.totalorder %s209, %s223
      %p225 = scmp.eq.s32.totalorder %s33, 0
      %p226 = por %p224, %p225
      %s228 = sadd.s32 %s227, 1
      %p231 = scmp.eq.s32.totalorder %s27, 1
      %p232 = scmp.ne.s32.totalorder %s227, %s229
      %p233 = scmp.eq.s32.totalorder %s27, 0
      %p234 = por %p232, %p233
      %p235 = scmp.ne.s32.totalorder %s227, %s229
      %p236 = scmp.eq.s32.totalorder %s32, 1
      %p237 = por %p235, %p236
      %p238 = scmp.ne.s32.totalorder %s229, %s230
      %p239 = scmp.eq.s32.totalorder %s32, 0
      %p240 = por %p238, %p239
      %p241 = scmp.ne.s32.totalorder %s229, %s230
      %p242 = scmp.eq.s32.totalorder %s33, 1
      %p243 = por %p241, %p242
      %p245 = scmp.ne.s32.totalorder %s230, %s244
      %p246 = scmp.eq.s32.totalorder %s33, 0
      %p247 = por %p245, %p246
      %s249 = sadd.s32 %s248, 1
      %p252 = scmp.eq.s32.totalorder %s27, 1
      %p253 = scmp.ne.s32.totalorder %s248, %s250
      %p254 = scmp.eq.s32.totalorder %s27, 0
      %p255 = por %p253, %p254
      %p256 = scmp.ne.s32.totalorder %s248, %s250
      %p257 = scmp.eq.s32.totalorder %s32, 1
      %p258 = por %p256, %p257
      %p259 = scmp.ne.s32.totalorder %s250, %s251
      %p260 = scmp.eq.s32.totalorder %s32, 0
      %p261 = por %p259, %p260
      %p262 = scmp.ne.s32.totalorder %s250, %s251
      %p263 = scmp.eq.s32.totalorder %s33, 1
      %p264 = por %p262, %p263
      %p266 = scmp.ne.s32.totalorder %s251, %s265
      %p267 = scmp.eq.s32.totalorder %s33, 0
      %p268 = por %p266, %p267
      %s269 = ssub.s32 %s34, %s46
      %s270 = ssub.s32 %s35, %s42
      %s271 = sor.u32 %s269, %s270
      %p272 = scmp.eq.s32.totalorder %s271, 0
      %s274 = sadd.s32 %s273, 1
      %s275 = scalar_select %p272, %s273, %s274
      %p278 = pneg %p272
      %p279 = scmp.eq.s32.totalorder %s27, 1
      %p280 = por %p278, %p279
      %p281 = scmp.ne.s32.totalorder %s273, %s276
      %p282 = scmp.eq.s32.totalorder %s27, 0
      %p283 = por %p281, %p282
      %p284 = scmp.ne.s32.totalorder %s273, %s276
      %p285 = scmp.eq.s32.totalorder %s32, 1
      %p286 = por %p284, %p285
      %p287 = scmp.ne.s32.totalorder %s276, %s277
      %p288 = scmp.eq.s32.totalorder %s32, 0
      %p289 = por %p287, %p288
      %p290 = scmp.ne.s32.totalorder %s276, %s277
      %p291 = scmp.eq.s32.totalorder %s33, 1
      %p292 = por %p290, %p291
      %p294 = scmp.ne.s32.totalorder %s277, %s293
      %p295 = scmp.eq.s32.totalorder %s33, 0
      %p296 = por %p294, %p295
      %p297 = scmp.le.s32.totalorder 1, %s27
      %p298 = scmp.lt.s32.totalorder %s27, 3
      %p299 = pnand %p297, %p298
      %p300 = pneg %p299
      // Predicated region
      $region9: #{tpu_custom_call.1} parent=5 // pred_check
        _
      $region10: #{tpu_custom_call.1} parent=5 // pred_check_branch
        %302 = sbr.rel (%p299) target = $region12
      $region11: #{tpu_custom_call.1} parent=5 // pred_region
        %s303 = ssub.s32 %s27, 1
        // Predicated region
        $region13: #{tpu_custom_call.1} parent=11 // pred_check
          %p304 = pneg %p114
        $region14: #{tpu_custom_call.1} parent=11 // pred_check_branch
          %306 = sbr.rel (%p304) target = $region16
        $region15: #{tpu_custom_call.1} parent=11 // pred_region
          %s308 = ssub.s32 512, 512
          %309 = vsyncadd [#allocation8], %s308
          %s310 = sshll.u32 [#allocation9], 4
          %s311 = int_to_ptr.vmem [resolvable:$true] %s310
          %316 = dma.hbm_to_vmem [thread:$0]  %s2, 512, %s311, [#allocation8], 128, 128, 8
        $region16: #{tpu_custom_call.1} parent=11 // pred_fallthru
          _
        // Predicated region
        $region17: #{tpu_custom_call.1} parent=11 // pred_check
          %p317 = pneg %p135
        $region18: #{tpu_custom_call.1} parent=11 // pred_check_branch
          %319 = sbr.rel (%p317) target = $region20
        $region19: #{tpu_custom_call.1} parent=11 // pred_region
          _
        $region20: #{tpu_custom_call.1} parent=11 // pred_fallthru
          _
        // Predicated region
        $region21: #{tpu_custom_call.1} parent=11 // pred_check
          %p320 = pneg %p156
        $region22: #{tpu_custom_call.1} parent=11 // pred_check_branch
          %322 = sbr.rel (%p320) target = $region24
        $region23: #{tpu_custom_call.1} parent=11 // pred_region
          %s324 = ssub.s32 512, 512
          %325 = vsyncadd [#allocation11], %s324
          %s326 = sshll.u32 [#allocation10], 4
          %s327 = int_to_ptr.vmem [resolvable:$true] %s326
          %332 = dma.hbm_to_vmem [thread:$0]  %s4, 512, %s327, [#allocation11], 128, 128, 8
        $region24: #{tpu_custom_call.1} parent=11 // pred_fallthru
          _
        // Predicated region
        $region25: #{tpu_custom_call.1} parent=11 // pred_check
          %p333 = pneg %p177
        $region26: #{tpu_custom_call.1} parent=11 // pred_check_branch
          %335 = sbr.rel (%p333) target = $region28
        $region27: #{tpu_custom_call.1} parent=11 // pred_region
          _
        $region28: #{tpu_custom_call.1} parent=11 // pred_fallthru
          _
        // Predicated region
        $region29: #{tpu_custom_call.1} parent=11 // pred_check
          %p336 = pneg %p198
        $region30: #{tpu_custom_call.1} parent=11 // pred_check_branch
          %338 = sbr.rel (%p336) target = $region32
        $region31: #{tpu_custom_call.1} parent=11 // pred_region
          %s340 = ssub.s32 512, 512
          %341 = vsyncadd [#allocation11], %s340
          %s342 = sshll.u32 [#allocation12], 4
          %s343 = int_to_ptr.vmem [resolvable:$true] %s342
          %348 = dma.hbm_to_vmem [thread:$0]  %s6, 512, %s343, [#allocation11], 128, 128, 8
        $region32: #{tpu_custom_call.1} parent=11 // pred_fallthru
          _
        // Predicated region
        $region33: #{tpu_custom_call.1} parent=11 // pred_check
          %p349 = pneg %p219
        $region34: #{tpu_custom_call.1} parent=11 // pred_check_branch
          %351 = sbr.rel (%p349) target = $region36
        $region35: #{tpu_custom_call.1} parent=11 // pred_region
          _
        $region36: #{tpu_custom_call.1} parent=11 // pred_fallthru
          _
        // Predicated region
        $region37: #{tpu_custom_call.1} parent=11 // pred_check
          %p352 = pneg %p240
        $region38: #{tpu_custom_call.1} parent=11 // pred_check_branch
          %354 = sbr.rel (%p352) target = $region40
        $region39: #{tpu_custom_call.1} parent=11 // pred_region
          %s356 = ssub.s32 512, 512
          %357 = vsyncadd [#allocation14], %s356
          %s358 = sshll.u32 [#allocation13], 4
          %s359 = int_to_ptr.vmem [resolvable:$true] %s358
          %364 = dma.hbm_to_vmem [thread:$0]  %s8, 512, %s359, [#allocation14], 128, 128, 8
        $region40: #{tpu_custom_call.1} parent=11 // pred_fallthru
          _
        // Predicated region
        $region41: #{tpu_custom_call.1} parent=11 // pred_check
          %p365 = pneg %p261
        $region42: #{tpu_custom_call.1} parent=11 // pred_check_branch
          %367 = sbr.rel (%p365) target = $region44
        $region43: #{tpu_custom_call.1} parent=11 // pred_region
          _
        $region44: #{tpu_custom_call.1} parent=11 // pred_fallthru
          _
      $region12: #{tpu_custom_call.1} parent=5 // pred_fallthru
        _
      %p368 = scmp.lt.s32.totalorder %s27, 2
      // Predicated region
      $region45: #{tpu_custom_call.1} parent=5 // pred_check
        %p369 = pneg %p368
      $region46: #{tpu_custom_call.1} parent=5 // pred_check_branch
        %371 = sbr.rel (%p369) target = $region48
      $region47: #{tpu_custom_call.1} parent=5 // pred_region
        // Predicated region
        $region49: #{tpu_custom_call.1} parent=47 // pred_check
          %p372 = pneg %p61
        $region50: #{tpu_custom_call.1} parent=47 // pred_check_branch
          %374 = sbr.rel (%p372) target = $region52
        $region51: #{tpu_custom_call.1} parent=47 // pred_region
          %s375 = sand.u32 %s51, 1
          %s376 = scalar_lea.sflag [#allocation5], %s375
          %s377 = sand.u32 %s51, 1
          %s378 = smul.addr %s377, 16
          %s379 = scalar_lea.vmem [#allocation4], %s378
          %s380 = smul.u32 2, %s35
          %s382 = ssub.s32 256, 256
          %383 = vsyncadd %s376, %s382
          %s384 = smul.addr %s34, 2
          %s385 = sadd.s32 %s380, %s384
          %s386 = smul.addr %s385, 128
          %s387 = scalar_lea.hbm %s0, %s386
          %s388 = sshll.u32 %s379, 4
          %s389 = int_to_ptr.vmem [resolvable:$true] %s388
          %394 = dma.hbm_to_vmem [thread:$0]  %s387, 256, %s389, %s376, 128, 128, 8
        $region52: #{tpu_custom_call.1} parent=47 // pred_fallthru
          _
        // Predicated region
        $region53: #{tpu_custom_call.1} parent=47 // pred_check
          %p395 = pneg %p87
        $region54: #{tpu_custom_call.1} parent=47 // pred_check_branch
          %397 = sbr.rel (%p395) target = $region56
        $region55: #{tpu_custom_call.1} parent=47 // pred_region
          %s398 = sand.u32 %s27, 1
          %s399 = scalar_lea.sflag [#allocation8], %s398
          %s400 = sand.u32 %s77, 1
          %s401 = smul.addr %s400, 8
          %s402 = scalar_lea.vmem [#allocation7], %s401
          %s404 = ssub.s32 128, 128
          %405 = vsyncadd %s399, %s404
          %s406 = smul.addr %s34, 128
          %s407 = scalar_lea.hbm %s1, %s406
          %s409 = sshll.u32 %s402, 4
          %s410 = int_to_ptr.vmem [resolvable:$true] %s409
          %412 = dma.hbm_to_vmem [thread:$0]  %s407, 128, %s410, %s399
        $region56: #{tpu_custom_call.1} parent=47 // pred_fallthru
          _
      $region48: #{tpu_custom_call.1} parent=5 // pred_fallthru
        _
      %p413 = scmp.le.s32.totalorder 1, %s27
      %p414 = scmp.lt.s32.totalorder %s27, 3
      %p415 = pnand %p413, %p414
      %p416 = pneg %p415
      // Predicated region
      $region57: #{tpu_custom_call.1} parent=5 // pred_check
        _
      $region58: #{tpu_custom_call.1} parent=5 // pred_check_branch
        %418 = sbr.rel (%p415) target = $region60
      $region59: #{tpu_custom_call.1} parent=5 // pred_region
        %s419 = ssub.s32 %s27, 1
        %s420 = sand.u32 %s54, 1
        %s421 = scalar_lea.sflag [#allocation5], %s420
        %s422 = sand.u32 %s54, 1
        %s423 = smul.addr %s422, 16
        %s424 = scalar_lea.vmem [#allocation4], %s423
        // Predicated region
        $region61: #{tpu_custom_call.1} parent=59 // pred_check
          %p425 = pneg %p67
        $region62: #{tpu_custom_call.1} parent=59 // pred_check_branch
          %427 = sbr.rel (%p425) target = $region64
        $region63: #{tpu_custom_call.1} parent=59 // pred_region
          %428 = dma.done %s421, 256
        $region64: #{tpu_custom_call.1} parent=59 // pred_fallthru
          _
        %s429 = sand.u32 %s32, 1
        %s430 = scalar_lea.sflag [#allocation8], %s429
        %s431 = sand.u32 %s80, 1
        %s432 = smul.addr %s431, 8
        %s433 = scalar_lea.vmem [#allocation7], %s432
        // Predicated region
        $region65: #{tpu_custom_call.1} parent=59 // pred_check
          %p434 = pneg %p93
        $region66: #{tpu_custom_call.1} parent=59 // pred_check_branch
          %436 = sbr.rel (%p434) target = $region68
        $region67: #{tpu_custom_call.1} parent=59 // pred_region
          %437 = dma.done %s430, 128
        $region68: #{tpu_custom_call.1} parent=59 // pred_fallthru
          _
        // Predicated region
        $region69: #{tpu_custom_call.1} parent=59 // pred_check
          %p438 = pneg %p114
        $region70: #{tpu_custom_call.1} parent=59 // pred_check_branch
          %440 = sbr.rel (%p438) target = $region72
        $region71: #{tpu_custom_call.1} parent=59 // pred_region
          %441 = dma.done [#allocation8], 512
        $region72: #{tpu_custom_call.1} parent=59 // pred_fallthru
          _
        // Predicated region
        $region73: #{tpu_custom_call.1} parent=59 // pred_check
          %p442 = pneg %p156
        $region74: #{tpu_custom_call.1} parent=59 // pred_check_branch
          %444 = sbr.rel (%p442) target = $region76
        $region75: #{tpu_custom_call.1} parent=59 // pred_region
          %445 = dma.done [#allocation11], 512
        $region76: #{tpu_custom_call.1} parent=59 // pred_fallthru
          _
        // Predicated region
        $region77: #{tpu_custom_call.1} parent=59 // pred_check
          %p446 = pneg %p198
        $region78: #{tpu_custom_call.1} parent=59 // pred_check_branch
          %448 = sbr.rel (%p446) target = $region80
        $region79: #{tpu_custom_call.1} parent=59 // pred_region
          %449 = dma.done [#allocation11], 512
        $region80: #{tpu_custom_call.1} parent=59 // pred_fallthru
          _
        // Predicated region
        $region81: #{tpu_custom_call.1} parent=59 // pred_check
          %p450 = pneg %p240
        $region82: #{tpu_custom_call.1} parent=59 // pred_check_branch
          %452 = sbr.rel (%p450) target = $region84
        $region83: #{tpu_custom_call.1} parent=59 // pred_region
          %453 = dma.done [#allocation14], 512
        $region84: #{tpu_custom_call.1} parent=59 // pred_fallthru
          _
        %s454 = sand.u32 %s54, 1
        %s455 = scalar_lea.sflag [#allocation5], %s454
        %s456 = sand.u32 %s54, 1
        %s457 = smul.addr %s456, 16
        %s458 = scalar_lea.vmem [#allocation4], %s457
        %p459 = pneg %p67
        %p460 = pneg %p64
        %s461 = sand.u32 %s32, 1
        %s462 = scalar_lea.sflag [#allocation8], %s461
        %s463 = sand.u32 %s80, 1
        %s464 = smul.addr %s463, 8
        %s465 = scalar_lea.vmem [#allocation7], %s464
        %p466 = pneg %p93
        %p467 = pneg %p90
        %p468 = pneg %p114
        %p469 = pneg %p111
        %p470 = pneg %p135
        %p471 = pneg %p132
        %p472 = pneg %p156
        %p473 = pneg %p153
        %p474 = pneg %p177
        %p475 = pneg %p174
        %p476 = pneg %p198
        %p477 = pneg %p195
        %p478 = pneg %p219
        %p479 = pneg %p216
        %p480 = pneg %p240
        %p481 = pneg %p237
        %p482 = pneg %p261
        %p483 = pneg %p258
        %p484 = pneg %p289
        %p485 = pneg %p286
        %s486 = sand.u32 %s276, 1
        %s487 = scalar_lea.sflag [#allocation6], %s486
        %s488 = sand.u32 %s276, 1
        %s489 = smul.addr %s488, 16
        %s490 = scalar_lea.vmem [#allocation15], %s489
        %s491 = smul.u32 2, %s37
        %s492 = smul.u32 2, %s37
        %p493 = scmp.eq.s32.totalorder %s37, 0
        // Predicated region
        $region85: #{tpu_custom_call.1} parent=59 // pred_check
          %p494 = pneg %p493
        $region86: #{tpu_custom_call.1} parent=59 // pred_check_branch
          %496 = sbr.rel (%p494) target = $region88
        $region87: #{tpu_custom_call.1} parent=59 // pred_region
          %v497 = vld [vmem:[%s433] sm:$0xff]
          %v498 = vld [vmem:[#allocation10] sm:$0xff]
          %v499 = vld [vmem:[#allocation10 + $0x8] sm:$0xff]
          %v500 = vld [vmem:[#allocation10 + $0x10] sm:$0xff]
          %v501 = vld [vmem:[#allocation10 + $0x18] sm:$0xff]
          %v502 = vld [vmem:[%s5] sm:$0x1]
          %v504 = vlaneseq
          %v505 = vshrl.u32 %v504, 7
          %v506 = vsub.s32 0, %v505
          %v507 = vrot.slane %v502, %v506
          %vm509 = vcmask 261120
          %v511 = vsel %vm509, %v497, 0
          %513 = vmatprep.subr.mxu0 0.0
          %514 = vmatpush1.msra.mxu0 %v498
          %515 = vmatprep.subr.mxu0 0.0
          %516 = vmatpush1.msra.mxu0 %v499
          %517 = vmatprep.subr.mxu0 0.0
          %518 = vmatpush1.msra.mxu0 %v500
          %519 = vmatprep.subr.mxu0 0.0
          %520 = vmatpush1.msra.mxu0 %v501
          %521 = vmatprep.subr.mxu0 0.0
          %522 = vmatpush1.msra.mxu0 0.0
          %523 = vmatprep.subr.mxu0 0.0
          %524 = vmatpush1.msra.mxu0 0.0
          %525 = vmatprep.subr.mxu0 0.0
          %526 = vmatpush1.msra.mxu0 0.0
          %527 = vmatprep.subr.mxu0 0.0
          %528 = vmatpush1.msra.mxu0 0.0
          %529 = vmatprep.subr.mxu0 0.0
          %530 = vmatpush1.msra.mxu0 0.0
          %531 = vmatprep.subr.mxu0 0.0
          %532 = vmatpush1.msra.mxu0 0.0
          %533 = vmatprep.subr.mxu0 0.0
          %534 = vmatpush1.msra.mxu0 0.0
          %535 = vmatprep.subr.mxu0 0.0
          %536 = vmatpush1.msra.mxu0 0.0
          %537 = vmatprep.subr.mxu0 0.0
          %538 = vmatpush1.msra.mxu0 0.0
          %539 = vmatprep.subr.mxu0 0.0
          %540 = vmatpush1.msra.mxu0 0.0
          %541 = vmatprep.subr.mxu0 0.0
          %542 = vmatpush1.msra.mxu0 0.0
          %543 = vmatprep.subr.mxu0 0.0
          %544 = vmatpush1.msra.mxu0 0.0
          %545 = vmatprep.subr.mxu0 0.0
          %546 = vmatpush1.msra.mxu0 0.0
          %547 = vmatprep.subr.mxu0 0.0
          %548 = vmatpush1.msra.mxu0 0.0
          %549 = vmatprep.subr.mxu0 0.0
          %550 = vmatpush1.msra.mxu0 0.0
          %551 = vmatprep.subr.mxu0 0.0
          %552 = vmatpush1.msra.mxu0 0.0
          %553 = vmatprep.subr.mxu0 0.0
          %554 = vmatpush1.msra.mxu0 0.0
          %555 = vmatprep.subr.mxu0 0.0
          %556 = vmatpush1.msra.mxu0 0.0
          %557 = vmatprep.subr.mxu0 0.0
          %558 = vmatpush1.msra.mxu0 0.0
          %559 = vmatprep.subr.mxu0 0.0
          %560 = vmatpush1.msra.mxu0 0.0
          %561 = vmatprep.subr.mxu0 0.0
          %562 = vmatpush1.msra.mxu0 0.0
          %563 = vmatprep.subr.mxu0 0.0
          %564 = vmatpush1.msra.mxu0 0.0
          %565 = vmatprep.subr.mxu0 0.0
          %566 = vmatpush1.msra.mxu0 0.0
          %567 = vmatprep.subr.mxu0 0.0
          %568 = vmatpush1.msra.mxu0 0.0
          %569 = vmatprep.subr.mxu0 0.0
          %570 = vmatpush1.msra.mxu0 0.0
          %571 = vmatprep.subr.mxu0 0.0
          %572 = vmatpush1.msra.mxu0 0.0
          %573 = vmatprep.subr.mxu0 0.0
          %574 = vmatpush1.msra.mxu0 0.0
          %575 = vmatprep.subr.mxu0 0.0
          %576 = vmatpush1.msra.mxu0 0.0
          %577 = vmatprep.mubr.f32.mxu0 0.0
          %578 = vmatmul.mubr.f32.gmra.mrb[0].mxu0 %v511
          %v579 = vpop.f32.mrb[0].mxu0
          %v580 = vadd.f32 %v507, %v579
          %v581 = vpop.f32.mrb[0].mxu0
          %582 = vdwg.mxu0
          %v583 = vld [vmem:[#allocation12] sm:$0xff]
          %v584 = vld [vmem:[#allocation12 + $0x8] sm:$0xff]
          %v585 = vld [vmem:[#allocation12 + $0x10] sm:$0xff]
          %v586 = vld [vmem:[#allocation12 + $0x18] sm:$0xff]
          %v587 = vld [vmem:[%s7] sm:$0x1]
          %v589 = vlaneseq
          %v590 = vshrl.u32 %v589, 7
          %v591 = vsub.s32 0, %v590
          %v592 = vrot.slane %v587, %v591
          %594 = vmatprep.subr.mxu0 0.0
          %595 = vmatpush1.msra.mxu0 %v583
          %596 = vmatprep.subr.mxu0 0.0
          %597 = vmatpush1.msra.mxu0 %v584
          %598 = vmatprep.subr.mxu0 0.0
          %599 = vmatpush1.msra.mxu0 %v585
          %600 = vmatprep.subr.mxu0 0.0
          %601 = vmatpush1.msra.mxu0 %v586
          %602 = vmatprep.subr.mxu0 0.0
          %603 = vmatpush1.msra.mxu0 0.0
          %604 = vmatprep.subr.mxu0 0.0
          %605 = vmatpush1.msra.mxu0 0.0
          %606 = vmatprep.subr.mxu0 0.0
          %607 = vmatpush1.msra.mxu0 0.0
          %608 = vmatprep.subr.mxu0 0.0
          %609 = vmatpush1.msra.mxu0 0.0
          %610 = vmatprep.subr.mxu0 0.0
          %611 = vmatpush1.msra.mxu0 0.0
          %612 = vmatprep.subr.mxu0 0.0
          %613 = vmatpush1.msra.mxu0 0.0
          %614 = vmatprep.subr.mxu0 0.0
          %615 = vmatpush1.msra.mxu0 0.0
          %616 = vmatprep.subr.mxu0 0.0
          %617 = vmatpush1.msra.mxu0 0.0
          %618 = vmatprep.subr.mxu0 0.0
          %619 = vmatpush1.msra.mxu0 0.0
          %620 = vmatprep.subr.mxu0 0.0
          %621 = vmatpush1.msra.mxu0 0.0
          %622 = vmatprep.subr.mxu0 0.0
          %623 = vmatpush1.msra.mxu0 0.0
          %624 = vmatprep.subr.mxu0 0.0
          %625 = vmatpush1.msra.mxu0 0.0
          %626 = vmatprep.subr.mxu0 0.0
          %627 = vmatpush1.msra.mxu0 0.0
          %628 = vmatprep.subr.mxu0 0.0
          %629 = vmatpush1.msra.mxu0 0.0
          %630 = vmatprep.subr.mxu0 0.0
          %631 = vmatpush1.msra.mxu0 0.0
          %632 = vmatprep.subr.mxu0 0.0
          %633 = vmatpush1.msra.mxu0 0.0
          %634 = vmatprep.subr.mxu0 0.0
          %635 = vmatpush1.msra.mxu0 0.0
          %636 = vmatprep.subr.mxu0 0.0
          %637 = vmatpush1.msra.mxu0 0.0
          %638 = vmatprep.subr.mxu0 0.0
          %639 = vmatpush1.msra.mxu0 0.0
          %640 = vmatprep.subr.mxu0 0.0
          %641 = vmatpush1.msra.mxu0 0.0
          %642 = vmatprep.subr.mxu0 0.0
          %643 = vmatpush1.msra.mxu0 0.0
          %644 = vmatprep.subr.mxu0 0.0
          %645 = vmatpush1.msra.mxu0 0.0
          %646 = vmatprep.subr.mxu0 0.0
          %647 = vmatpush1.msra.mxu0 0.0
          %648 = vmatprep.subr.mxu0 0.0
          %649 = vmatpush1.msra.mxu0 0.0
          %650 = vmatprep.subr.mxu0 0.0
          %651 = vmatpush1.msra.mxu0 0.0
          %652 = vmatprep.subr.mxu0 0.0
          %653 = vmatpush1.msra.mxu0 0.0
          %654 = vmatprep.subr.mxu0 0.0
          %655 = vmatpush1.msra.mxu0 0.0
          %656 = vmatprep.subr.mxu0 0.0
          %657 = vmatpush1.msra.mxu0 0.0
          %658 = vmatprep.mubr.f32.mxu0 0.0
          %659 = vmatmul.mubr.f32.gmra.mrb[0].mxu0 %v511
          %v660 = vpop.f32.mrb[0].mxu0
          %v661 = vadd.f32 %v592, %v660
          %v662 = vpop.f32.mrb[0].mxu0
          %663 = vdwg.mxu0
          %664 = vst.msk [vmem:[#allocation2] sm:$0xff] %vm509, %v580
          %665 = vst.msk [vmem:[#allocation3] sm:$0xff] %vm509, %v661
        $region88: #{tpu_custom_call.1} parent=59 // pred_fallthru
          _
        %v666 = vld [vmem:[%s424] sm:$0xff]
        %v667 = vld [vmem:[%s424 + $0x8] sm:$0xff]
        %v668 = vld [vmem:[#allocation9] sm:$0xff]
        %v669 = vld [vmem:[#allocation9 + $0x8] sm:$0xff]
        %v670 = vld [vmem:[#allocation9 + $0x10] sm:$0xff]
        %v671 = vld [vmem:[#allocation9 + $0x18] sm:$0xff]
        %v672 = vld [vmem:[%s3] sm:$0x1]
        %v674 = vlaneseq
        %v675 = vshrl.u32 %v674, 7
        %v676 = vsub.s32 0, %v675
        %v677 = vrot.slane %v672, %v676
        %vm679 = vcmask 261120
        %v681 = vsel %vm679, %v666, 0
        %v684 = vsel %vm679, %v667, 0
        %686 = vmatprep.subr.mxu0 0.0
        %687 = vmatpush1.msra.mxu0 %v668
        %688 = vmatprep.subr.mxu0 0.0
        %689 = vmatpush1.msra.mxu0 %v669
        %690 = vmatprep.subr.mxu0 0.0
        %691 = vmatpush1.msra.mxu0 %v670
        %692 = vmatprep.subr.mxu0 0.0
        %693 = vmatpush1.msra.mxu0 %v671
        %694 = vmatprep.subr.mxu0 0.0
        %695 = vmatpush1.msra.mxu0 0.0
        %696 = vmatprep.subr.mxu0 0.0
        %697 = vmatpush1.msra.mxu0 0.0
        %698 = vmatprep.subr.mxu0 0.0
        %699 = vmatpush1.msra.mxu0 0.0
        %700 = vmatprep.subr.mxu0 0.0
        %701 = vmatpush1.msra.mxu0 0.0
        %702 = vmatprep.subr.mxu0 0.0
        %703 = vmatpush1.msra.mxu0 0.0
        %704 = vmatprep.subr.mxu0 0.0
        %705 = vmatpush1.msra.mxu0 0.0
        %706 = vmatprep.subr.mxu0 0.0
        %707 = vmatpush1.msra.mxu0 0.0
        %708 = vmatprep.subr.mxu0 0.0
        %709 = vmatpush1.msra.mxu0 0.0
        %710 = vmatprep.subr.mxu0 0.0
        %711 = vmatpush1.msra.mxu0 0.0
        %712 = vmatprep.subr.mxu0 0.0
        %713 = vmatpush1.msra.mxu0 0.0
        %714 = vmatprep.subr.mxu0 0.0
        %715 = vmatpush1.msra.mxu0 0.0
        %716 = vmatprep.subr.mxu0 0.0
        %717 = vmatpush1.msra.mxu0 0.0
        %718 = vmatprep.subr.mxu0 0.0
        %719 = vmatpush1.msra.mxu0 0.0
        %720 = vmatprep.subr.mxu0 0.0
        %721 = vmatpush1.msra.mxu0 0.0
        %722 = vmatprep.subr.mxu0 0.0
        %723 = vmatpush1.msra.mxu0 0.0
        %724 = vmatprep.subr.mxu0 0.0
        %725 = vmatpush1.msra.mxu0 0.0
        %726 = vmatprep.subr.mxu0 0.0
        %727 = vmatpush1.msra.mxu0 0.0
        %728 = vmatprep.subr.mxu0 0.0
        %729 = vmatpush1.msra.mxu0 0.0
        %730 = vmatprep.subr.mxu0 0.0
        %731 = vmatpush1.msra.mxu0 0.0
        %732 = vmatprep.subr.mxu0 0.0
        %733 = vmatpush1.msra.mxu0 0.0
        %734 = vmatprep.subr.mxu0 0.0
        %735 = vmatpush1.msra.mxu0 0.0
        %736 = vmatprep.subr.mxu0 0.0
        %737 = vmatpush1.msra.mxu0 0.0
        %738 = vmatprep.subr.mxu0 0.0
        %739 = vmatpush1.msra.mxu0 0.0
        %740 = vmatprep.subr.mxu0 0.0
        %741 = vmatpush1.msra.mxu0 0.0
        %742 = vmatprep.subr.mxu0 0.0
        %743 = vmatpush1.msra.mxu0 0.0
        %744 = vmatprep.subr.mxu0 0.0
        %745 = vmatpush1.msra.mxu0 0.0
        %746 = vmatprep.subr.mxu0 0.0
        %747 = vmatpush1.msra.mxu0 0.0
        %748 = vmatprep.subr.mxu0 0.0
        %749 = vmatpush1.msra.mxu0 0.0
        %750 = vmatprep.mubr.f32.mxu0 0.0
        %751 = vmatmul.mubr.f32.gmra.mrb[0].mxu0 %v681
        %v752 = vpop.f32.mrb[0].mxu0
        %v753 = vadd.f32 %v677, %v752
        %v754 = vpop.f32.mrb[0].mxu0
        %755 = vmatprep.mubr.f32.mxu0 0.0
        %756 = vmatmul.mubr.f32.gmra.mrb[0].mxu0 %v684
        %v757 = vpop.f32.mrb[0].mxu0
        %v758 = vadd.f32 %v677, %v757
        %v759 = vpop.f32.mrb[0].mxu0
        %760 = vdwg.mxu0
        %v761 = vmul.f32 %v753, 0.35355338
        %v762 = vmul.f32 %v758, 0.35355338
        %v763 = vld [vmem:[#allocation2] sm:$0xff]
        %v764 = vld [vmem:[#allocation3] sm:$0xff]
        %vm765 = vcmask 64512
        %v767 = vsel %vm765, %v761, 0
        %v770 = vsel %vm765, %v762, 0
        %v773 = vsel %vm765, %v763, 0
        %775 = vmatprep.subr.mxu0 0.0
        %776 = vmatpush1.xpose.msra.mxu0 %v773
        %777 = vmatprep.subr.mxu0 0.0
        %778 = vmatpush1.xpose.msra.mxu0 0.0
        %779 = vmatprep.subr.mxu0 0.0
        %780 = vmatpush1.xpose.msra.mxu0 0.0
        %781 = vmatprep.subr.mxu0 0.0
        %782 = vmatpush1.xpose.msra.mxu0 0.0
        %783 = vmatprep.subr.mxu0 0.0
        %784 = vmatpush1.xpose.msra.mxu0 0.0
        %785 = vmatprep.subr.mxu0 0.0
        %786 = vmatpush1.xpose.msra.mxu0 0.0
        %787 = vmatprep.subr.mxu0 0.0
        %788 = vmatpush1.xpose.msra.mxu0 0.0
        %789 = vmatprep.subr.mxu0 0.0
        %790 = vmatpush1.xpose.msra.mxu0 0.0
        %791 = vmatprep.subr.mxu0 0.0
        %792 = vmatpush1.xpose.msra.mxu0 0.0
        %793 = vmatprep.subr.mxu0 0.0
        %794 = vmatpush1.xpose.msra.mxu0 0.0
        %795 = vmatprep.subr.mxu0 0.0
        %796 = vmatpush1.xpose.msra.mxu0 0.0
        %797 = vmatprep.subr.mxu0 0.0
        %798 = vmatpush1.xpose.msra.mxu0 0.0
        %799 = vmatprep.subr.mxu0 0.0
        %800 = vmatpush1.xpose.msra.mxu0 0.0
        %801 = vmatprep.subr.mxu0 0.0
        %802 = vmatpush1.xpose.msra.mxu0 0.0
        %803 = vmatprep.subr.mxu0 0.0
        %804 = vmatpush1.xpose.msra.mxu0 0.0
        %805 = vmatprep.subr.mxu0 0.0
        %806 = vmatpush1.xpose.msra.mxu0 0.0
        %807 = vmatprep.subr.mxu0 0.0
        %808 = vmatpush1.xpose.msra.mxu0 0.0
        %809 = vmatprep.subr.mxu0 0.0
        %810 = vmatpush1.xpose.msra.mxu0 0.0
        %811 = vmatprep.subr.mxu0 0.0
        %812 = vmatpush1.xpose.msra.mxu0 0.0
        %813 = vmatprep.subr.mxu0 0.0
        %814 = vmatpush1.xpose.msra.mxu0 0.0
        %815 = vmatprep.subr.mxu0 0.0
        %816 = vmatpush1.xpose.msra.mxu0 0.0
        %817 = vmatprep.subr.mxu0 0.0
        %818 = vmatpush1.xpose.msra.mxu0 0.0
        %819 = vmatprep.subr.mxu0 0.0
        %820 = vmatpush1.xpose.msra.mxu0 0.0
        %821 = vmatprep.subr.mxu0 0.0
        %822 = vmatpush1.xpose.msra.mxu0 0.0
        %823 = vmatprep.subr.mxu0 0.0
        %824 = vmatpush1.xpose.msra.mxu0 0.0
        %825 = vmatprep.subr.mxu0 0.0
        %826 = vmatpush1.xpose.msra.mxu0 0.0
        %827 = vmatprep.subr.mxu0 0.0
        %828 = vmatpush1.xpose.msra.mxu0 0.0
        %829 = vmatprep.subr.mxu0 0.0
        %830 = vmatpush1.xpose.msra.mxu0 0.0
        %831 = vmatprep.subr.mxu0 0.0
        %832 = vmatpush1.xpose.msra.mxu0 0.0
        %833 = vmatprep.subr.mxu0 0.0
        %834 = vmatpush1.xpose.msra.mxu0 0.0
        %835 = vmatprep.subr.mxu0 0.0
        %836 = vmatpush1.xpose.msra.mxu0 0.0
        %837 = vmatprep.subr.mxu0 0.0
        %838 = vmatpush1.xpose.msra.mxu0 0.0
        %839 = vmatprep.mubr.f32.mxu0 0.0
        %840 = vmatmul.mubr.f32.gmra.mrb[0].mxu0 %v767
        %v841 = vpop.f32.mrb[0].mxu0
        %v842 = vadd.f32 0.0, %v841
        %v843 = vpop.f32.mrb[0].mxu0
        %844 = vmatprep.mubr.f32.mxu0 0.0
        %845 = vmatmul.mubr.f32.gmra.mrb[0].mxu0 %v770
        %v846 = vpop.f32.mrb[0].mxu0
        %v847 = vadd.f32 0.0, %v846
        %v848 = vpop.f32.mrb[0].mxu0
        %849 = vdwg.mxu0
        %v850 = vsel %vm765, %v842, -inf
        %851 = vmax.xlane.f32.xlu0 %v850
        %v852 = vpop.xlane.xlu0 %851
        %v853 = vsel %vm765, %v847, -inf
        %854 = vmax.xlane.f32.xlu0 %v853
        %v855 = vpop.xlane.xlu0 %854
        %v856 = vsub.f32 %v842, %v852
        %v857 = vsub.f32 %v847, %v855
        %v858 = vmul.f32 %v856, 1.442695
        %v859 = vpow.pop %v858
        %v860 = vmul.f32 %v857, 1.442695
        %v861 = vpow.pop %v860
        %v862 = vsel %vm765, %v859, 0.0
        %863 = vadd.xlane.f32.xlu0 %v862
        %v864 = vpop.xlane.xlu0 %863
        %v865 = vsel %vm765, %v861, 0.0
        %866 = vadd.xlane.f32.xlu0 %v865
        %v867 = vpop.xlane.xlu0 %866
        %v868 = vrcp.pop %v864
        %v869 = vrcp.pop %v867
        %v870 = vmul.f32 %v859, %v868
        %v871 = vmul.f32 %v861, %v869
        %v873 = vsel %vm765, %v870, 0
        %v876 = vsel %vm765, %v871, 0
        %878 = vmatprep.subr.mxu0 0.0
        %879 = vmatpush1.msra.mxu0 %v764
        %880 = vmatprep.subr.mxu0 0.0
        %881 = vmatpush1.msra.mxu0 0.0
        %882 = vmatprep.subr.mxu0 0.0
        %883 = vmatpush1.msra.mxu0 0.0
        %884 = vmatprep.subr.mxu0 0.0
        %885 = vmatpush1.msra.mxu0 0.0
        %886 = vmatprep.subr.mxu0 0.0
        %887 = vmatpush1.msra.mxu0 0.0
        %888 = vmatprep.subr.mxu0 0.0
        %889 = vmatpush1.msra.mxu0 0.0
        %890 = vmatprep.subr.mxu0 0.0
        %891 = vmatpush1.msra.mxu0 0.0
        %892 = vmatprep.subr.mxu0 0.0
        %893 = vmatpush1.msra.mxu0 0.0
        %894 = vmatprep.subr.mxu0 0.0
        %895 = vmatpush1.msra.mxu0 0.0
        %896 = vmatprep.subr.mxu0 0.0
        %897 = vmatpush1.msra.mxu0 0.0
        %898 = vmatprep.subr.mxu0 0.0
        %899 = vmatpush1.msra.mxu0 0.0
        %900 = vmatprep.subr.mxu0 0.0
        %901 = vmatpush1.msra.mxu0 0.0
        %902 = vmatprep.subr.mxu0 0.0
        %903 = vmatpush1.msra.mxu0 0.0
        %904 = vmatprep.subr.mxu0 0.0
        %905 = vmatpush1.msra.mxu0 0.0
        %906 = vmatprep.subr.mxu0 0.0
        %907 = vmatpush1.msra.mxu0 0.0
        %908 = vmatprep.subr.mxu0 0.0
        %909 = vmatpush1.msra.mxu0 0.0
        %910 = vmatprep.subr.mxu0 0.0
        %911 = vmatpush1.msra.mxu0 0.0
        %912 = vmatprep.subr.mxu0 0.0
        %913 = vmatpush1.msra.mxu0 0.0
        %914 = vmatprep.subr.mxu0 0.0
        %915 = vmatpush1.msra.mxu0 0.0
        %916 = vmatprep.subr.mxu0 0.0
        %917 = vmatpush1.msra.mxu0 0.0
        %918 = vmatprep.subr.mxu0 0.0
        %919 = vmatpush1.msra.mxu0 0.0
        %920 = vmatprep.subr.mxu0 0.0
        %921 = vmatpush1.msra.mxu0 0.0
        %922 = vmatprep.subr.mxu0 0.0
        %923 = vmatpush1.msra.mxu0 0.0
        %924 = vmatprep.subr.mxu0 0.0
        %925 = vmatpush1.msra.mxu0 0.0
        %926 = vmatprep.subr.mxu0 0.0
        %927 = vmatpush1.msra.mxu0 0.0
        %928 = vmatprep.subr.mxu0 0.0
        %929 = vmatpush1.msra.mxu0 0.0
        %930 = vmatprep.subr.mxu0 0.0
        %931 = vmatpush1.msra.mxu0 0.0
        %932 = vmatprep.subr.mxu0 0.0
        %933 = vmatpush1.msra.mxu0 0.0
        %934 = vmatprep.subr.mxu0 0.0
        %935 = vmatpush1.msra.mxu0 0.0
        %936 = vmatprep.subr.mxu0 0.0
        %937 = vmatpush1.msra.mxu0 0.0
        %938 = vmatprep.subr.mxu0 0.0
        %939 = vmatpush1.msra.mxu0 0.0
        %940 = vmatprep.subr.mxu0 0.0
        %941 = vmatpush1.msra.mxu0 0.0
        %942 = vmatprep.mubr.f32.mxu0 0.0
        %943 = vmatmul.mubr.f32.gmra.mrb[0].mxu0 %v873
        %v944 = vpop.f32.mrb[0].mxu0
        %v945 = vadd.f32 0.0, %v944
        %v946 = vpop.f32.mrb[0].mxu0
        %947 = vmatprep.mubr.f32.mxu0 0.0
        %948 = vmatmul.mubr.f32.gmra.mrb[0].mxu0 %v876
        %v949 = vpop.f32.mrb[0].mxu0
        %v950 = vadd.f32 0.0, %v949
        %v951 = vpop.f32.mrb[0].mxu0
        %952 = vdwg.mxu0
        %v953 = vld [vmem:[#allocation13] sm:$0xff]
        %954 = vrot.lane.b32.xlu0 %v761, 120
        %v955 = vpop.permute.xlu0 %954
        %956 = vrot.lane.b32.xlu0 %v762, 120
        %v957 = vpop.permute.xlu0 %956
        %958 = vrot.lane.b32.xlu0 %v763, 120
        %v959 = vpop.permute.xlu0 %958
        %v960 = vsel %vm765, %v955, 0
        %v962 = vsel %vm765, %v957, 0
        %v964 = vsel %vm765, %v959, 0
        %966 = vmatprep.subr.mxu0 0.0
        %967 = vmatpush1.xpose.msra.mxu0 %v964
        %968 = vmatprep.subr.mxu0 0.0
        %969 = vmatpush1.xpose.msra.mxu0 0.0
        %970 = vmatprep.subr.mxu0 0.0
        %971 = vmatpush1.xpose.msra.mxu0 0.0
        %972 = vmatprep.subr.mxu0 0.0
        %973 = vmatpush1.xpose.msra.mxu0 0.0
        %974 = vmatprep.subr.mxu0 0.0
        %975 = vmatpush1.xpose.msra.mxu0 0.0
        %976 = vmatprep.subr.mxu0 0.0
        %977 = vmatpush1.xpose.msra.mxu0 0.0
        %978 = vmatprep.subr.mxu0 0.0
        %979 = vmatpush1.xpose.msra.mxu0 0.0
        %980 = vmatprep.subr.mxu0 0.0
        %981 = vmatpush1.xpose.msra.mxu0 0.0
        %982 = vmatprep.subr.mxu0 0.0
        %983 = vmatpush1.xpose.msra.mxu0 0.0
        %984 = vmatprep.subr.mxu0 0.0
        %985 = vmatpush1.xpose.msra.mxu0 0.0
        %986 = vmatprep.subr.mxu0 0.0
        %987 = vmatpush1.xpose.msra.mxu0 0.0
        %988 = vmatprep.subr.mxu0 0.0
        %989 = vmatpush1.xpose.msra.mxu0 0.0
        %990 = vmatprep.subr.mxu0 0.0
        %991 = vmatpush1.xpose.msra.mxu0 0.0
        %992 = vmatprep.subr.mxu0 0.0
        %993 = vmatpush1.xpose.msra.mxu0 0.0
        %994 = vmatprep.subr.mxu0 0.0
        %995 = vmatpush1.xpose.msra.mxu0 0.0
        %996 = vmatprep.subr.mxu0 0.0
        %997 = vmatpush1.xpose.msra.mxu0 0.0
        %998 = vmatprep.subr.mxu0 0.0
        %999 = vmatpush1.xpose.msra.mxu0 0.0
        %1000 = vmatprep.subr.mxu0 0.0
        %1001 = vmatpush1.xpose.msra.mxu0 0.0
        %1002 = vmatprep.subr.mxu0 0.0
        %1003 = vmatpush1.xpose.msra.mxu0 0.0
        %1004 = vmatprep.subr.mxu0 0.0
        %1005 = vmatpush1.xpose.msra.mxu0 0.0
        %1006 = vmatprep.subr.mxu0 0.0
        %1007 = vmatpush1.xpose.msra.mxu0 0.0
        %1008 = vmatprep.subr.mxu0 0.0
        %1009 = vmatpush1.xpose.msra.mxu0 0.0
        %1010 = vmatprep.subr.mxu0 0.0
        %1011 = vmatpush1.xpose.msra.mxu0 0.0
        %1012 = vmatprep.subr.mxu0 0.0
        %1013 = vmatpush1.xpose.msra.mxu0 0.0
        %1014 = vmatprep.subr.mxu0 0.0
        %1015 = vmatpush1.xpose.msra.mxu0 0.0
        %1016 = vmatprep.subr.mxu0 0.0
        %1017 = vmatpush1.xpose.msra.mxu0 0.0
        %1018 = vmatprep.subr.mxu0 0.0
        %1019 = vmatpush1.xpose.msra.mxu0 0.0
        %1020 = vmatprep.subr.mxu0 0.0
        %1021 = vmatpush1.xpose.msra.mxu0 0.0
        %1022 = vmatprep.subr.mxu0 0.0
        %1023 = vmatpush1.xpose.msra.mxu0 0.0
        %1024 = vmatprep.subr.mxu0 0.0
        %1025 = vmatpush1.xpose.msra.mxu0 0.0
        %1026 = vmatprep.subr.mxu0 0.0
        %1027 = vmatpush1.xpose.msra.mxu0 0.0
        %1028 = vmatprep.subr.mxu0 0.0
        %1029 = vmatpush1.xpose.msra.mxu0 0.0
        %1030 = vmatprep.mubr.f32.mxu0 0.0
        %1031 = vmatmul.mubr.f32.gmra.mrb[0].mxu0 %v960
        %v1032 = vpop.f32.mrb[0].mxu0
        %v1033 = vadd.f32 0.0, %v1032
        %v1034 = vpop.f32.mrb[0].mxu0
        %1035 = vmatprep.mubr.f32.mxu0 0.0
        %1036 = vmatmul.mubr.f32.gmra.mrb[0].mxu0 %v962
        %v1037 = vpop.f32.mrb[0].mxu0
        %v1038 = vadd.f32 0.0, %v1037
        %v1039 = vpop.f32.mrb[0].mxu0
        %1040 = vdwg.mxu0
        %v1041 = vsel %vm765, %v1033, -inf
        %1042 = vmax.xlane.f32.xlu0 %v1041
        %v1043 = vpop.xlane.xlu0 %1042
        %v1044 = vsel %vm765, %v1038, -inf
        %1045 = vmax.xlane.f32.xlu0 %v1044
        %v1046 = vpop.xlane.xlu0 %1045
        %v1047 = vsub.f32 %v1033, %v1043
        %v1048 = vsub.f32 %v1038, %v1046
        %v1049 = vmul.f32 %v1047, 1.442695
        %v1050 = vpow.pop %v1049
        %v1051 = vmul.f32 %v1048, 1.442695
        %v1052 = vpow.pop %v1051
        %v1053 = vsel %vm765, %v1050, 0.0
        %1054 = vadd.xlane.f32.xlu0 %v1053
        %v1055 = vpop.xlane.xlu0 %1054
        %v1056 = vsel %vm765, %v1052, 0.0
        %1057 = vadd.xlane.f32.xlu0 %v1056
        %v1058 = vpop.xlane.xlu0 %1057
        %v1059 = vrcp.pop %v1055
        %v1060 = vrcp.pop %v1058
        %v1061 = vmul.f32 %v1050, %v1059
        %v1062 = vmul.f32 %v1052, %v1060
        %1064 = vrot.lane.b32.xlu0 %v764, 120
        %v1065 = vpop.permute.xlu0 %1064
        %v1068 = vsel %vm765, %v1061, 0
        %v1071 = vsel %vm765, %v1062, 0
        %1073 = vmatprep.subr.mxu0 0.0
        %1074 = vmatpush1.msra.mxu0 %v1065
        %1075 = vmatprep.subr.mxu0 0.0
        %1076 = vmatpush1.msra.mxu0 0.0
        %1077 = vmatprep.subr.mxu0 0.0
        %1078 = vmatpush1.msra.mxu0 0.0
        %1079 = vmatprep.subr.mxu0 0.0
        %1080 = vmatpush1.msra.mxu0 0.0
        %1081 = vmatprep.subr.mxu0 0.0
        %1082 = vmatpush1.msra.mxu0 0.0
        %1083 = vmatprep.subr.mxu0 0.0
        %1084 = vmatpush1.msra.mxu0 0.0
        %1085 = vmatprep.subr.mxu0 0.0
        %1086 = vmatpush1.msra.mxu0 0.0
        %1087 = vmatprep.subr.mxu0 0.0
        %1088 = vmatpush1.msra.mxu0 0.0
        %1089 = vmatprep.subr.mxu0 0.0
        %1090 = vmatpush1.msra.mxu0 0.0
        %1091 = vmatprep.subr.mxu0 0.0
        %1092 = vmatpush1.msra.mxu0 0.0
        %1093 = vmatprep.subr.mxu0 0.0
        %1094 = vmatpush1.msra.mxu0 0.0
        %1095 = vmatprep.subr.mxu0 0.0
        %1096 = vmatpush1.msra.mxu0 0.0
        %1097 = vmatprep.subr.mxu0 0.0
        %1098 = vmatpush1.msra.mxu0 0.0
        %1099 = vmatprep.subr.mxu0 0.0
        %1100 = vmatpush1.msra.mxu0 0.0
        %1101 = vmatprep.subr.mxu0 0.0
        %1102 = vmatpush1.msra.mxu0 0.0
        %1103 = vmatprep.subr.mxu0 0.0
        %1104 = vmatpush1.msra.mxu0 0.0
        %1105 = vmatprep.subr.mxu0 0.0
        %1106 = vmatpush1.msra.mxu0 0.0
        %1107 = vmatprep.subr.mxu0 0.0
        %1108 = vmatpush1.msra.mxu0 0.0
        %1109 = vmatprep.subr.mxu0 0.0
        %1110 = vmatpush1.msra.mxu0 0.0
        %1111 = vmatprep.subr.mxu0 0.0
        %1112 = vmatpush1.msra.mxu0 0.0
        %1113 = vmatprep.subr.mxu0 0.0
        %1114 = vmatpush1.msra.mxu0 0.0
        %1115 = vmatprep.subr.mxu0 0.0
        %1116 = vmatpush1.msra.mxu0 0.0
        %1117 = vmatprep.subr.mxu0 0.0
        %1118 = vmatpush1.msra.mxu0 0.0
        %1119 = vmatprep.subr.mxu0 0.0
        %1120 = vmatpush1.msra.mxu0 0.0
        %1121 = vmatprep.subr.mxu0 0.0
        %1122 = vmatpush1.msra.mxu0 0.0
        %1123 = vmatprep.subr.mxu0 0.0
        %1124 = vmatpush1.msra.mxu0 0.0
        %1125 = vmatprep.subr.mxu0 0.0
        %1126 = vmatpush1.msra.mxu0 0.0
        %1127 = vmatprep.subr.mxu0 0.0
        %1128 = vmatpush1.msra.mxu0 0.0
        %1129 = vmatprep.subr.mxu0 0.0
        %1130 = vmatpush1.msra.mxu0 0.0
        %1131 = vmatprep.subr.mxu0 0.0
        %1132 = vmatpush1.msra.mxu0 0.0
        %1133 = vmatprep.subr.mxu0 0.0
        %1134 = vmatpush1.msra.mxu0 0.0
        %1135 = vmatprep.subr.mxu0 0.0
        %1136 = vmatpush1.msra.mxu0 0.0
        %1137 = vmatprep.mubr.f32.mxu0 0.0
        %1138 = vmatmul.mubr.f32.gmra.mrb[0].mxu0 %v1068
        %v1139 = vpop.f32.mrb[0].mxu0
        %v1140 = vadd.f32 0.0, %v1139
        %v1141 = vpop.f32.mrb[0].mxu0
        %1142 = vmatprep.mubr.f32.mxu0 0.0
        %1143 = vmatmul.mubr.f32.gmra.mrb[0].mxu0 %v1071
        %v1144 = vpop.f32.mrb[0].mxu0
        %v1145 = vadd.f32 0.0, %v1144
        %v1146 = vpop.f32.mrb[0].mxu0
        %1147 = vdwg.mxu0
        %v1148 = vld [vmem:[#allocation13 + $0x8] sm:$0xff]
        %v1150 = vsel %vm765, %v1140, 0
        %v1153 = vsel %vm765, %v1145, 0
        %1155 = vmatprep.subr.mxu0 0.0
        %1156 = vmatpush1.msra.mxu0 %v1148
        %1157 = vmatprep.subr.mxu0 0.0
        %1158 = vmatpush1.msra.mxu0 0.0
        %1159 = vmatprep.subr.mxu0 0.0
        %1160 = vmatpush1.msra.mxu0 0.0
        %1161 = vmatprep.subr.mxu0 0.0
        %1162 = vmatpush1.msra.mxu0 0.0
        %1163 = vmatprep.subr.mxu0 0.0
        %1164 = vmatpush1.msra.mxu0 0.0
        %1165 = vmatprep.subr.mxu0 0.0
        %1166 = vmatpush1.msra.mxu0 0.0
        %1167 = vmatprep.subr.mxu0 0.0
        %1168 = vmatpush1.msra.mxu0 0.0
        %1169 = vmatprep.subr.mxu0 0.0
        %1170 = vmatpush1.msra.mxu0 0.0
        %1171 = vmatprep.subr.mxu0 0.0
        %1172 = vmatpush1.msra.mxu0 0.0
        %1173 = vmatprep.subr.mxu0 0.0
        %1174 = vmatpush1.msra.mxu0 0.0
        %1175 = vmatprep.subr.mxu0 0.0
        %1176 = vmatpush1.msra.mxu0 0.0
        %1177 = vmatprep.subr.mxu0 0.0
        %1178 = vmatpush1.msra.mxu0 0.0
        %1179 = vmatprep.subr.mxu0 0.0
        %1180 = vmatpush1.msra.mxu0 0.0
        %1181 = vmatprep.subr.mxu0 0.0
        %1182 = vmatpush1.msra.mxu0 0.0
        %1183 = vmatprep.subr.mxu0 0.0
        %1184 = vmatpush1.msra.mxu0 0.0
        %1185 = vmatprep.subr.mxu0 0.0
        %1186 = vmatpush1.msra.mxu0 0.0
        %1187 = vmatprep.subr.mxu0 0.0
        %1188 = vmatpush1.msra.mxu0 0.0
        %1189 = vmatprep.subr.mxu0 0.0
        %1190 = vmatpush1.msra.mxu0 0.0
        %1191 = vmatprep.subr.mxu0 0.0
        %1192 = vmatpush1.msra.mxu0 0.0
        %1193 = vmatprep.subr.mxu0 0.0
        %1194 = vmatpush1.msra.mxu0 0.0
        %1195 = vmatprep.subr.mxu0 0.0
        %1196 = vmatpush1.msra.mxu0 0.0
        %1197 = vmatprep.subr.mxu0 0.0
        %1198 = vmatpush1.msra.mxu0 0.0
        %1199 = vmatprep.subr.mxu0 0.0
        %1200 = vmatpush1.msra.mxu0 0.0
        %1201 = vmatprep.subr.mxu0 0.0
        %1202 = vmatpush1.msra.mxu0 0.0
        %1203 = vmatprep.subr.mxu0 0.0
        %1204 = vmatpush1.msra.mxu0 0.0
        %1205 = vmatprep.subr.mxu0 0.0
        %1206 = vmatpush1.msra.mxu0 0.0
        %1207 = vmatprep.subr.mxu0 0.0
        %1208 = vmatpush1.msra.mxu0 0.0
        %1209 = vmatprep.subr.mxu0 0.0
        %1210 = vmatpush1.msra.mxu0 0.0
        %1211 = vmatprep.subr.mxu0 0.0
        %1212 = vmatpush1.msra.mxu0 0.0
        %1213 = vmatprep.subr.mxu0 0.0
        %1214 = vmatpush1.msra.mxu0 0.0
        %1215 = vmatprep.subr.mxu0 0.0
        %1216 = vmatpush1.msra.mxu0 0.0
        %1217 = vmatprep.subr.mxu0 0.0
        %1218 = vmatpush1.msra.mxu0 0.0
        %1219 = vmatprep.mubr.f32.mxu0 0.0
        %1220 = vmatmul.mubr.f32.gmra.mrb[0].mxu0 %v1150
        %v1221 = vpop.f32.mrb[0].mxu0
        %v1222 = vadd.f32 0.0, %v1221
        %v1223 = vpop.f32.mrb[0].mxu0
        %1224 = vmatprep.mubr.f32.mxu0 0.0
        %1225 = vmatmul.mubr.f32.gmra.mrb[0].mxu0 %v1153
        %v1226 = vpop.f32.mrb[0].mxu0
        %v1227 = vadd.f32 0.0, %v1226
        %v1228 = vpop.f32.mrb[0].mxu0
        %1229 = vdwg.mxu0
        %v1231 = vsel %vm765, %v945, 0
        %v1234 = vsel %vm765, %v950, 0
        %1236 = vmatprep.subr.mxu0 0.0
        %1237 = vmatpush1.msra.mxu0 %v953
        %1238 = vmatprep.subr.mxu0 0.0
        %1239 = vmatpush1.msra.mxu0 0.0
        %1240 = vmatprep.subr.mxu0 0.0
        %1241 = vmatpush1.msra.mxu0 0.0
        %1242 = vmatprep.subr.mxu0 0.0
        %1243 = vmatpush1.msra.mxu0 0.0
        %1244 = vmatprep.subr.mxu0 0.0
        %1245 = vmatpush1.msra.mxu0 0.0
        %1246 = vmatprep.subr.mxu0 0.0
        %1247 = vmatpush1.msra.mxu0 0.0
        %1248 = vmatprep.subr.mxu0 0.0
        %1249 = vmatpush1.msra.mxu0 0.0
        %1250 = vmatprep.subr.mxu0 0.0
        %1251 = vmatpush1.msra.mxu0 0.0
        %1252 = vmatprep.subr.mxu0 0.0
        %1253 = vmatpush1.msra.mxu0 0.0
        %1254 = vmatprep.subr.mxu0 0.0
        %1255 = vmatpush1.msra.mxu0 0.0
        %1256 = vmatprep.subr.mxu0 0.0
        %1257 = vmatpush1.msra.mxu0 0.0
        %1258 = vmatprep.subr.mxu0 0.0
        %1259 = vmatpush1.msra.mxu0 0.0
        %1260 = vmatprep.subr.mxu0 0.0
        %1261 = vmatpush1.msra.mxu0 0.0
        %1262 = vmatprep.subr.mxu0 0.0
        %1263 = vmatpush1.msra.mxu0 0.0
        %1264 = vmatprep.subr.mxu0 0.0
        %1265 = vmatpush1.msra.mxu0 0.0
        %1266 = vmatprep.subr.mxu0 0.0
        %1267 = vmatpush1.msra.mxu0 0.0
        %1268 = vmatprep.subr.mxu0 0.0
        %1269 = vmatpush1.msra.mxu0 0.0
        %1270 = vmatprep.subr.mxu0 0.0
        %1271 = vmatpush1.msra.mxu0 0.0
        %1272 = vmatprep.subr.mxu0 0.0
        %1273 = vmatpush1.msra.mxu0 0.0
        %1274 = vmatprep.subr.mxu0 0.0
        %1275 = vmatpush1.msra.mxu0 0.0
        %1276 = vmatprep.subr.mxu0 0.0
        %1277 = vmatpush1.msra.mxu0 0.0
        %1278 = vmatprep.subr.mxu0 0.0
        %1279 = vmatpush1.msra.mxu0 0.0
        %1280 = vmatprep.subr.mxu0 0.0
        %1281 = vmatpush1.msra.mxu0 0.0
        %1282 = vmatprep.subr.mxu0 0.0
        %1283 = vmatpush1.msra.mxu0 0.0
        %1284 = vmatprep.subr.mxu0 0.0
        %1285 = vmatpush1.msra.mxu0 0.0
        %1286 = vmatprep.subr.mxu0 0.0
        %1287 = vmatpush1.msra.mxu0 0.0
        %1288 = vmatprep.subr.mxu0 0.0
        %1289 = vmatpush1.msra.mxu0 0.0
        %1290 = vmatprep.subr.mxu0 0.0
        %1291 = vmatpush1.msra.mxu0 0.0
        %1292 = vmatprep.subr.mxu0 0.0
        %1293 = vmatpush1.msra.mxu0 0.0
        %1294 = vmatprep.subr.mxu0 0.0
        %1295 = vmatpush1.msra.mxu0 0.0
        %1296 = vmatprep.subr.mxu0 0.0
        %1297 = vmatpush1.msra.mxu0 0.0
        %1298 = vmatprep.subr.mxu0 0.0
        %1299 = vmatpush1.msra.mxu0 0.0
        %1300 = vmatprep.mubr.f32.mxu0 0.0
        %1301 = vmatmul.mubr.f32.gmra.mrb[0].mxu0 %v1231
        %v1302 = vpop.f32.mrb[0].mxu0
        %v1303 = vadd.f32 %v1222, %v1302
        %v1304 = vpop.f32.mrb[0].mxu0
        %1305 = vmatprep.mubr.f32.mxu0 0.0
        %1306 = vmatmul.mubr.f32.gmra.mrb[0].mxu0 %v1234
        %v1307 = vpop.f32.mrb[0].mxu0
        %v1308 = vadd.f32 %v1227, %v1307
        %v1309 = vpop.f32.mrb[0].mxu0
        %1310 = vdwg.mxu0
        %1311 = vrot.lane.b32.xlu0 %v761, 112
        %v1312 = vpop.permute.xlu0 %1311
        %1313 = vrot.lane.b32.xlu0 %v762, 112
        %v1314 = vpop.permute.xlu0 %1313
        %1315 = vrot.lane.b32.xlu0 %v763, 112
        %v1316 = vpop.permute.xlu0 %1315
        %v1317 = vsel %vm765, %v1312, 0
        %v1319 = vsel %vm765, %v1314, 0
        %v1321 = vsel %vm765, %v1316, 0
        %1323 = vmatprep.subr.mxu0 0.0
        %1324 = vmatpush1.xpose.msra.mxu0 %v1321
        %1325 = vmatprep.subr.mxu0 0.0
        %1326 = vmatpush1.xpose.msra.mxu0 0.0
        %1327 = vmatprep.subr.mxu0 0.0
        %1328 = vmatpush1.xpose.msra.mxu0 0.0
        %1329 = vmatprep.subr.mxu0 0.0
        %1330 = vmatpush1.xpose.msra.mxu0 0.0
        %1331 = vmatprep.subr.mxu0 0.0
        %1332 = vmatpush1.xpose.msra.mxu0 0.0
        %1333 = vmatprep.subr.mxu0 0.0
        %1334 = vmatpush1.xpose.msra.mxu0 0.0
        %1335 = vmatprep.subr.mxu0 0.0
        %1336 = vmatpush1.xpose.msra.mxu0 0.0
        %1337 = vmatprep.subr.mxu0 0.0
        %1338 = vmatpush1.xpose.msra.mxu0 0.0
        %1339 = vmatprep.subr.mxu0 0.0
        %1340 = vmatpush1.xpose.msra.mxu0 0.0
        %1341 = vmatprep.subr.mxu0 0.0
        %1342 = vmatpush1.xpose.msra.mxu0 0.0
        %1343 = vmatprep.subr.mxu0 0.0
        %1344 = vmatpush1.xpose.msra.mxu0 0.0
        %1345 = vmatprep.subr.mxu0 0.0
        %1346 = vmatpush1.xpose.msra.mxu0 0.0
        %1347 = vmatprep.subr.mxu0 0.0
        %1348 = vmatpush1.xpose.msra.mxu0 0.0
        %1349 = vmatprep.subr.mxu0 0.0
        %1350 = vmatpush1.xpose.msra.mxu0 0.0
        %1351 = vmatprep.subr.mxu0 0.0
        %1352 = vmatpush1.xpose.msra.mxu0 0.0
        %1353 = vmatprep.subr.mxu0 0.0
        %1354 = vmatpush1.xpose.msra.mxu0 0.0
        %1355 = vmatprep.subr.mxu0 0.0
        %1356 = vmatpush1.xpose.msra.mxu0 0.0
        %1357 = vmatprep.subr.mxu0 0.0
        %1358 = vmatpush1.xpose.msra.mxu0 0.0
        %1359 = vmatprep.subr.mxu0 0.0
        %1360 = vmatpush1.xpose.msra.mxu0 0.0
        %1361 = vmatprep.subr.mxu0 0.0
        %1362 = vmatpush1.xpose.msra.mxu0 0.0
        %1363 = vmatprep.subr.mxu0 0.0
        %1364 = vmatpush1.xpose.msra.mxu0 0.0
        %1365 = vmatprep.subr.mxu0 0.0
        %1366 = vmatpush1.xpose.msra.mxu0 0.0
        %1367 = vmatprep.subr.mxu0 0.0
        %1368 = vmatpush1.xpose.msra.mxu0 0.0
        %1369 = vmatprep.subr.mxu0 0.0
        %1370 = vmatpush1.xpose.msra.mxu0 0.0
        %1371 = vmatprep.subr.mxu0 0.0
        %1372 = vmatpush1.xpose.msra.mxu0 0.0
        %1373 = vmatprep.subr.mxu0 0.0
        %1374 = vmatpush1.xpose.msra.mxu0 0.0
        %1375 = vmatprep.subr.mxu0 0.0
        %1376 = vmatpush1.xpose.msra.mxu0 0.0
        %1377 = vmatprep.subr.mxu0 0.0
        %1378 = vmatpush1.xpose.msra.mxu0 0.0
        %1379 = vmatprep.subr.mxu0 0.0
        %1380 = vmatpush1.xpose.msra.mxu0 0.0
        %1381 = vmatprep.subr.mxu0 0.0
        %1382 = vmatpush1.xpose.msra.mxu0 0.0
        %1383 = vmatprep.subr.mxu0 0.0
        %1384 = vmatpush1.xpose.msra.mxu0 0.0
        %1385 = vmatprep.subr.mxu0 0.0
        %1386 = vmatpush1.xpose.msra.mxu0 0.0
        %1387 = vmatprep.mubr.f32.mxu0 0.0
        %1388 = vmatmul.mubr.f32.gmra.mrb[0].mxu0 %v1317
        %v1389 = vpop.f32.mrb[0].mxu0
        %v1390 = vadd.f32 0.0, %v1389
        %v1391 = vpop.f32.mrb[0].mxu0
        %1392 = vmatprep.mubr.f32.mxu0 0.0
        %1393 = vmatmul.mubr.f32.gmra.mrb[0].mxu0 %v1319
        %v1394 = vpop.f32.mrb[0].mxu0
        %v1395 = vadd.f32 0.0, %v1394
        %v1396 = vpop.f32.mrb[0].mxu0
        %1397 = vdwg.mxu0
        %v1398 = vsel %vm765, %v1390, -inf
        %1399 = vmax.xlane.f32.xlu0 %v1398
        %v1400 = vpop.xlane.xlu0 %1399
        %v1401 = vsel %vm765, %v1395, -inf
        %1402 = vmax.xlane.f32.xlu0 %v1401
        %v1403 = vpop.xlane.xlu0 %1402
        %v1404 = vsub.f32 %v1390, %v1400
        %v1405 = vsub.f32 %v1395, %v1403
        %v1406 = vmul.f32 %v1404, 1.442695
        %v1407 = vpow.pop %v1406
        %v1408 = vmul.f32 %v1405, 1.442695
        %v1409 = vpow.pop %v1408
        %v1410 = vsel %vm765, %v1407, 0.0
        %1411 = vadd.xlane.f32.xlu0 %v1410
        %v1412 = vpop.xlane.xlu0 %1411
        %v1413 = vsel %vm765, %v1409, 0.0
        %1414 = vadd.xlane.f32.xlu0 %v1413
        %v1415 = vpop.xlane.xlu0 %1414
        %v1416 = vrcp.pop %v1412
        %v1417 = vrcp.pop %v1415
        %v1418 = vmul.f32 %v1407, %v1416
        %v1419 = vmul.f32 %v1409, %v1417
        %1420 = vrot.lane.b32.xlu0 %v764, 112
        %v1421 = vpop.permute.xlu0 %1420
        %v1424 = vsel %vm765, %v1418, 0
        %v1427 = vsel %vm765, %v1419, 0
        %1429 = vmatprep.subr.mxu0 0.0
        %1430 = vmatpush1.msra.mxu0 %v1421
        %1431 = vmatprep.subr.mxu0 0.0
        %1432 = vmatpush1.msra.mxu0 0.0
        %1433 = vmatprep.subr.mxu0 0.0
        %1434 = vmatpush1.msra.mxu0 0.0
        %1435 = vmatprep.subr.mxu0 0.0
        %1436 = vmatpush1.msra.mxu0 0.0
        %1437 = vmatprep.subr.mxu0 0.0
        %1438 = vmatpush1.msra.mxu0 0.0
        %1439 = vmatprep.subr.mxu0 0.0
        %1440 = vmatpush1.msra.mxu0 0.0
        %1441 = vmatprep.subr.mxu0 0.0
        %1442 = vmatpush1.msra.mxu0 0.0
        %1443 = vmatprep.subr.mxu0 0.0
        %1444 = vmatpush1.msra.mxu0 0.0
        %1445 = vmatprep.subr.mxu0 0.0
        %1446 = vmatpush1.msra.mxu0 0.0
        %1447 = vmatprep.subr.mxu0 0.0
        %1448 = vmatpush1.msra.mxu0 0.0
        %1449 = vmatprep.subr.mxu0 0.0
        %1450 = vmatpush1.msra.mxu0 0.0
        %1451 = vmatprep.subr.mxu0 0.0
        %1452 = vmatpush1.msra.mxu0 0.0
        %1453 = vmatprep.subr.mxu0 0.0
        %1454 = vmatpush1.msra.mxu0 0.0
        %1455 = vmatprep.subr.mxu0 0.0
        %1456 = vmatpush1.msra.mxu0 0.0
        %1457 = vmatprep.subr.mxu0 0.0
        %1458 = vmatpush1.msra.mxu0 0.0
        %1459 = vmatprep.subr.mxu0 0.0
        %1460 = vmatpush1.msra.mxu0 0.0
        %1461 = vmatprep.subr.mxu0 0.0
        %1462 = vmatpush1.msra.mxu0 0.0
        %1463 = vmatprep.subr.mxu0 0.0
        %1464 = vmatpush1.msra.mxu0 0.0
        %1465 = vmatprep.subr.mxu0 0.0
        %1466 = vmatpush1.msra.mxu0 0.0
        %1467 = vmatprep.subr.mxu0 0.0
        %1468 = vmatpush1.msra.mxu0 0.0
        %1469 = vmatprep.subr.mxu0 0.0
        %1470 = vmatpush1.msra.mxu0 0.0
        %1471 = vmatprep.subr.mxu0 0.0
        %1472 = vmatpush1.msra.mxu0 0.0
        %1473 = vmatprep.subr.mxu0 0.0
        %1474 = vmatpush1.msra.mxu0 0.0
        %1475 = vmatprep.subr.mxu0 0.0
        %1476 = vmatpush1.msra.mxu0 0.0
        %1477 = vmatprep.subr.mxu0 0.0
        %1478 = vmatpush1.msra.mxu0 0.0
        %1479 = vmatprep.subr.mxu0 0.0
        %1480 = vmatpush1.msra.mxu0 0.0
        %1481 = vmatprep.subr.mxu0 0.0
        %1482 = vmatpush1.msra.mxu0 0.0
        %1483 = vmatprep.subr.mxu0 0.0
        %1484 = vmatpush1.msra.mxu0 0.0
        %1485 = vmatprep.subr.mxu0 0.0
        %1486 = vmatpush1.msra.mxu0 0.0
        %1487 = vmatprep.subr.mxu0 0.0
        %1488 = vmatpush1.msra.mxu0 0.0
        %1489 = vmatprep.subr.mxu0 0.0
        %1490 = vmatpush1.msra.mxu0 0.0
        %1491 = vmatprep.subr.mxu0 0.0
        %1492 = vmatpush1.msra.mxu0 0.0
        %1493 = vmatprep.mubr.f32.mxu0 0.0
        %1494 = vmatmul.mubr.f32.gmra.mrb[0].mxu0 %v1424
        %v1495 = vpop.f32.mrb[0].mxu0
        %v1496 = vadd.f32 0.0, %v1495
        %v1497 = vpop.f32.mrb[0].mxu0
        %1498 = vmatprep.mubr.f32.mxu0 0.0
        %1499 = vmatmul.mubr.f32.gmra.mrb[0].mxu0 %v1427
        %v1500 = vpop.f32.mrb[0].mxu0
        %v1501 = vadd.f32 0.0, %v1500
        %v1502 = vpop.f32.mrb[0].mxu0
        %1503 = vdwg.mxu0
        %v1504 = vld [vmem:[#allocation13 + $0x10] sm:$0xff]
        %v1506 = vsel %vm765, %v1496, 0
        %v1509 = vsel %vm765, %v1501, 0
        %1511 = vmatprep.subr.mxu0 0.0
        %1512 = vmatpush1.msra.mxu0 %v1504
        %1513 = vmatprep.subr.mxu0 0.0
        %1514 = vmatpush1.msra.mxu0 0.0
        %1515 = vmatprep.subr.mxu0 0.0
        %1516 = vmatpush1.msra.mxu0 0.0
        %1517 = vmatprep.subr.mxu0 0.0
        %1518 = vmatpush1.msra.mxu0 0.0
        %1519 = vmatprep.subr.mxu0 0.0
        %1520 = vmatpush1.msra.mxu0 0.0
        %1521 = vmatprep.subr.mxu0 0.0
        %1522 = vmatpush1.msra.mxu0 0.0
        %1523 = vmatprep.subr.mxu0 0.0
        %1524 = vmatpush1.msra.mxu0 0.0
        %1525 = vmatprep.subr.mxu0 0.0
        %1526 = vmatpush1.msra.mxu0 0.0
        %1527 = vmatprep.subr.mxu0 0.0
        %1528 = vmatpush1.msra.mxu0 0.0
        %1529 = vmatprep.subr.mxu0 0.0
        %1530 = vmatpush1.msra.mxu0 0.0
        %1531 = vmatprep.subr.mxu0 0.0
        %1532 = vmatpush1.msra.mxu0 0.0
        %1533 = vmatprep.subr.mxu0 0.0
        %1534 = vmatpush1.msra.mxu0 0.0
        %1535 = vmatprep.subr.mxu0 0.0
        %1536 = vmatpush1.msra.mxu0 0.0
        %1537 = vmatprep.subr.mxu0 0.0
        %1538 = vmatpush1.msra.mxu0 0.0
        %1539 = vmatprep.subr.mxu0 0.0
        %1540 = vmatpush1.msra.mxu0 0.0
        %1541 = vmatprep.subr.mxu0 0.0
        %1542 = vmatpush1.msra.mxu0 0.0
        %1543 = vmatprep.subr.mxu0 0.0
        %1544 = vmatpush1.msra.mxu0 0.0
        %1545 = vmatprep.subr.mxu0 0.0
        %1546 = vmatpush1.msra.mxu0 0.0
        %1547 = vmatprep.subr.mxu0 0.0
        %1548 = vmatpush1.msra.mxu0 0.0
        %1549 = vmatprep.subr.mxu0 0.0
        %1550 = vmatpush1.msra.mxu0 0.0
        %1551 = vmatprep.subr.mxu0 0.0
        %1552 = vmatpush1.msra.mxu0 0.0
        %1553 = vmatprep.subr.mxu0 0.0
        %1554 = vmatpush1.msra.mxu0 0.0
        %1555 = vmatprep.subr.mxu0 0.0
        %1556 = vmatpush1.msra.mxu0 0.0
        %1557 = vmatprep.subr.mxu0 0.0
        %1558 = vmatpush1.msra.mxu0 0.0
        %1559 = vmatprep.subr.mxu0 0.0
        %1560 = vmatpush1.msra.mxu0 0.0
        %1561 = vmatprep.subr.mxu0 0.0
        %1562 = vmatpush1.msra.mxu0 0.0
        %1563 = vmatprep.subr.mxu0 0.0
        %1564 = vmatpush1.msra.mxu0 0.0
        %1565 = vmatprep.subr.mxu0 0.0
        %1566 = vmatpush1.msra.mxu0 0.0
        %1567 = vmatprep.subr.mxu0 0.0
        %1568 = vmatpush1.msra.mxu0 0.0
        %1569 = vmatprep.subr.mxu0 0.0
        %1570 = vmatpush1.msra.mxu0 0.0
        %1571 = vmatprep.subr.mxu0 0.0
        %1572 = vmatpush1.msra.mxu0 0.0
        %1573 = vmatprep.subr.mxu0 0.0
        %1574 = vmatpush1.msra.mxu0 0.0
        %1575 = vmatprep.mubr.f32.mxu0 0.0
        %1576 = vmatmul.mubr.f32.gmra.mrb[0].mxu0 %v1506
        %v1577 = vpop.f32.mrb[0].mxu0
        %v1578 = vadd.f32 0.0, %v1577
        %v1579 = vpop.f32.mrb[0].mxu0
        %1580 = vmatprep.mubr.f32.mxu0 0.0
        %1581 = vmatmul.mubr.f32.gmra.mrb[0].mxu0 %v1509
        %v1582 = vpop.f32.mrb[0].mxu0
        %v1583 = vadd.f32 0.0, %v1582
        %v1584 = vpop.f32.mrb[0].mxu0
        %1585 = vdwg.mxu0
        %v1586 = vadd.f32 %v1303, %v1578
        %v1587 = vadd.f32 %v1308, %v1583
        %1588 = vrot.lane.b32.xlu0 %v761, 104
        %v1589 = vpop.permute.xlu0 %1588
        %1590 = vrot.lane.b32.xlu0 %v762, 104
        %v1591 = vpop.permute.xlu0 %1590
        %1592 = vrot.lane.b32.xlu0 %v763, 104
        %v1593 = vpop.permute.xlu0 %1592
        %v1594 = vsel %vm765, %v1589, 0
        %v1596 = vsel %vm765, %v1591, 0
        %v1598 = vsel %vm765, %v1593, 0
        %1600 = vmatprep.subr.mxu0 0.0
        %1601 = vmatpush1.xpose.msra.mxu0 %v1598
        %1602 = vmatprep.subr.mxu0 0.0
        %1603 = vmatpush1.xpose.msra.mxu0 0.0
        %1604 = vmatprep.subr.mxu0 0.0
        %1605 = vmatpush1.xpose.msra.mxu0 0.0
        %1606 = vmatprep.subr.mxu0 0.0
        %1607 = vmatpush1.xpose.msra.mxu0 0.0
        %1608 = vmatprep.subr.mxu0 0.0
        %1609 = vmatpush1.xpose.msra.mxu0 0.0
        %1610 = vmatprep.subr.mxu0 0.0
        %1611 = vmatpush1.xpose.msra.mxu0 0.0
        %1612 = vmatprep.subr.mxu0 0.0
        %1613 = vmatpush1.xpose.msra.mxu0 0.0
        %1614 = vmatprep.subr.mxu0 0.0
        %1615 = vmatpush1.xpose.msra.mxu0 0.0
        %1616 = vmatprep.subr.mxu0 0.0
        %1617 = vmatpush1.xpose.msra.mxu0 0.0
        %1618 = vmatprep.subr.mxu0 0.0
        %1619 = vmatpush1.xpose.msra.mxu0 0.0
        %1620 = vmatprep.subr.mxu0 0.0
        %1621 = vmatpush1.xpose.msra.mxu0 0.0
        %1622 = vmatprep.subr.mxu0 0.0
        %1623 = vmatpush1.xpose.msra.mxu0 0.0
        %1624 = vmatprep.subr.mxu0 0.0
        %1625 = vmatpush1.xpose.msra.mxu0 0.0
        %1626 = vmatprep.subr.mxu0 0.0
        %1627 = vmatpush1.xpose.msra.mxu0 0.0
        %1628 = vmatprep.subr.mxu0 0.0
        %1629 = vmatpush1.xpose.msra.mxu0 0.0
        %1630 = vmatprep.subr.mxu0 0.0
        %1631 = vmatpush1.xpose.msra.mxu0 0.0
        %1632 = vmatprep.subr.mxu0 0.0
        %1633 = vmatpush1.xpose.msra.mxu0 0.0
        %1634 = vmatprep.subr.mxu0 0.0
        %1635 = vmatpush1.xpose.msra.mxu0 0.0
        %1636 = vmatprep.subr.mxu0 0.0
        %1637 = vmatpush1.xpose.msra.mxu0 0.0
        %1638 = vmatprep.subr.mxu0 0.0
        %1639 = vmatpush1.xpose.msra.mxu0 0.0
        %1640 = vmatprep.subr.mxu0 0.0
        %1641 = vmatpush1.xpose.msra.mxu0 0.0
        %1642 = vmatprep.subr.mxu0 0.0
        %1643 = vmatpush1.xpose.msra.mxu0 0.0
        %1644 = vmatprep.subr.mxu0 0.0
        %1645 = vmatpush1.xpose.msra.mxu0 0.0
        %1646 = vmatprep.subr.mxu0 0.0
        %1647 = vmatpush1.xpose.msra.mxu0 0.0
        %1648 = vmatprep.subr.mxu0 0.0
        %1649 = vmatpush1.xpose.msra.mxu0 0.0
        %1650 = vmatprep.subr.mxu0 0.0
        %1651 = vmatpush1.xpose.msra.mxu0 0.0
        %1652 = vmatprep.subr.mxu0 0.0
        %1653 = vmatpush1.xpose.msra.mxu0 0.0
        %1654 = vmatprep.subr.mxu0 0.0
        %1655 = vmatpush1.xpose.msra.mxu0 0.0
        %1656 = vmatprep.subr.mxu0 0.0
        %1657 = vmatpush1.xpose.msra.mxu0 0.0
        %1658 = vmatprep.subr.mxu0 0.0
        %1659 = vmatpush1.xpose.msra.mxu0 0.0
        %1660 = vmatprep.subr.mxu0 0.0
        %1661 = vmatpush1.xpose.msra.mxu0 0.0
        %1662 = vmatprep.subr.mxu0 0.0
        %1663 = vmatpush1.xpose.msra.mxu0 0.0
        %1664 = vmatprep.mubr.f32.mxu0 0.0
        %1665 = vmatmul.mubr.f32.gmra.mrb[0].mxu0 %v1594
        %v1666 = vpop.f32.mrb[0].mxu0
        %v1667 = vadd.f32 0.0, %v1666
        %v1668 = vpop.f32.mrb[0].mxu0
        %1669 = vmatprep.mubr.f32.mxu0 0.0
        %1670 = vmatmul.mubr.f32.gmra.mrb[0].mxu0 %v1596
        %v1671 = vpop.f32.mrb[0].mxu0
        %v1672 = vadd.f32 0.0, %v1671
        %v1673 = vpop.f32.mrb[0].mxu0
        %1674 = vdwg.mxu0
        %v1675 = vsel %vm765, %v1667, -inf
        %1676 = vmax.xlane.f32.xlu0 %v1675
        %v1677 = vpop.xlane.xlu0 %1676
        %v1678 = vsel %vm765, %v1672, -inf
        %1679 = vmax.xlane.f32.xlu0 %v1678
        %v1680 = vpop.xlane.xlu0 %1679
        %v1681 = vsub.f32 %v1667, %v1677
        %v1682 = vsub.f32 %v1672, %v1680
        %v1683 = vmul.f32 %v1681, 1.442695
        %v1684 = vpow.pop %v1683
        %v1685 = vmul.f32 %v1682, 1.442695
        %v1686 = vpow.pop %v1685
        %v1687 = vsel %vm765, %v1684, 0.0
        %1688 = vadd.xlane.f32.xlu0 %v1687
        %v1689 = vpop.xlane.xlu0 %1688
        %v1690 = vsel %vm765, %v1686, 0.0
        %1691 = vadd.xlane.f32.xlu0 %v1690
        %v1692 = vpop.xlane.xlu0 %1691
        %v1693 = vrcp.pop %v1689
        %v1694 = vrcp.pop %v1692
        %v1695 = vmul.f32 %v1684, %v1693
        %v1696 = vmul.f32 %v1686, %v1694
        %1697 = vrot.lane.b32.xlu0 %v764, 104
        %v1698 = vpop.permute.xlu0 %1697
        %v1701 = vsel %vm765, %v1695, 0
        %v1704 = vsel %vm765, %v1696, 0
        %1706 = vmatprep.subr.mxu0 0.0
        %1707 = vmatpush1.msra.mxu0 %v1698
        %1708 = vmatprep.subr.mxu0 0.0
        %1709 = vmatpush1.msra.mxu0 0.0
        %1710 = vmatprep.subr.mxu0 0.0
        %1711 = vmatpush1.msra.mxu0 0.0
        %1712 = vmatprep.subr.mxu0 0.0
        %1713 = vmatpush1.msra.mxu0 0.0
        %1714 = vmatprep.subr.mxu0 0.0
        %1715 = vmatpush1.msra.mxu0 0.0
        %1716 = vmatprep.subr.mxu0 0.0
        %1717 = vmatpush1.msra.mxu0 0.0
        %1718 = vmatprep.subr.mxu0 0.0
        %1719 = vmatpush1.msra.mxu0 0.0
        %1720 = vmatprep.subr.mxu0 0.0
        %1721 = vmatpush1.msra.mxu0 0.0
        %1722 = vmatprep.subr.mxu0 0.0
        %1723 = vmatpush1.msra.mxu0 0.0
        %1724 = vmatprep.subr.mxu0 0.0
        %1725 = vmatpush1.msra.mxu0 0.0
        %1726 = vmatprep.subr.mxu0 0.0
        %1727 = vmatpush1.msra.mxu0 0.0
        %1728 = vmatprep.subr.mxu0 0.0
        %1729 = vmatpush1.msra.mxu0 0.0
        %1730 = vmatprep.subr.mxu0 0.0
        %1731 = vmatpush1.msra.mxu0 0.0
        %1732 = vmatprep.subr.mxu0 0.0
        %1733 = vmatpush1.msra.mxu0 0.0
        %1734 = vmatprep.subr.mxu0 0.0
        %1735 = vmatpush1.msra.mxu0 0.0
        %1736 = vmatprep.subr.mxu0 0.0
        %1737 = vmatpush1.msra.mxu0 0.0
        %1738 = vmatprep.subr.mxu0 0.0
        %1739 = vmatpush1.msra.mxu0 0.0
        %1740 = vmatprep.subr.mxu0 0.0
        %1741 = vmatpush1.msra.mxu0 0.0
        %1742 = vmatprep.subr.mxu0 0.0
        %1743 = vmatpush1.msra.mxu0 0.0
        %1744 = vmatprep.subr.mxu0 0.0
        %1745 = vmatpush1.msra.mxu0 0.0
        %1746 = vmatprep.subr.mxu0 0.0
        %1747 = vmatpush1.msra.mxu0 0.0
        %1748 = vmatprep.subr.mxu0 0.0
        %1749 = vmatpush1.msra.mxu0 0.0
        %1750 = vmatprep.subr.mxu0 0.0
        %1751 = vmatpush1.msra.mxu0 0.0
        %1752 = vmatprep.subr.mxu0 0.0
        %1753 = vmatpush1.msra.mxu0 0.0
        %1754 = vmatprep.subr.mxu0 0.0
        %1755 = vmatpush1.msra.mxu0 0.0
        %1756 = vmatprep.subr.mxu0 0.0
        %1757 = vmatpush1.msra.mxu0 0.0
        %1758 = vmatprep.subr.mxu0 0.0
        %1759 = vmatpush1.msra.mxu0 0.0
        %1760 = vmatprep.subr.mxu0 0.0
        %1761 = vmatpush1.msra.mxu0 0.0
        %1762 = vmatprep.subr.mxu0 0.0
        %1763 = vmatpush1.msra.mxu0 0.0
        %1764 = vmatprep.subr.mxu0 0.0
        %1765 = vmatpush1.msra.mxu0 0.0
        %1766 = vmatprep.subr.mxu0 0.0
        %1767 = vmatpush1.msra.mxu0 0.0
        %1768 = vmatprep.subr.mxu0 0.0
        %1769 = vmatpush1.msra.mxu0 0.0
        %1770 = vmatprep.mubr.f32.mxu0 0.0
        %1771 = vmatmul.mubr.f32.gmra.mrb[0].mxu0 %v1701
        %v1772 = vpop.f32.mrb[0].mxu0
        %v1773 = vadd.f32 0.0, %v1772
        %v1774 = vpop.f32.mrb[0].mxu0
        %1775 = vmatprep.mubr.f32.mxu0 0.0
        %1776 = vmatmul.mubr.f32.gmra.mrb[0].mxu0 %v1704
        %v1777 = vpop.f32.mrb[0].mxu0
        %v1778 = vadd.f32 0.0, %v1777
        %v1779 = vpop.f32.mrb[0].mxu0
        %1780 = vdwg.mxu0
        %v1781 = vld [vmem:[#allocation13 + $0x18] sm:$0xff]
        %v1783 = vsel %vm765, %v1773, 0
        %v1786 = vsel %vm765, %v1778, 0
        %1788 = vmatprep.subr.mxu0 0.0
        %1789 = vmatpush1.msra.mxu0 %v1781
        %1790 = vmatprep.subr.mxu0 0.0
        %1791 = vmatpush1.msra.mxu0 0.0
        %1792 = vmatprep.subr.mxu0 0.0
        %1793 = vmatpush1.msra.mxu0 0.0
        %1794 = vmatprep.subr.mxu0 0.0
        %1795 = vmatpush1.msra.mxu0 0.0
        %1796 = vmatprep.subr.mxu0 0.0
        %1797 = vmatpush1.msra.mxu0 0.0
        %1798 = vmatprep.subr.mxu0 0.0
        %1799 = vmatpush1.msra.mxu0 0.0
        %1800 = vmatprep.subr.mxu0 0.0
        %1801 = vmatpush1.msra.mxu0 0.0
        %1802 = vmatprep.subr.mxu0 0.0
        %1803 = vmatpush1.msra.mxu0 0.0
        %1804 = vmatprep.subr.mxu0 0.0
        %1805 = vmatpush1.msra.mxu0 0.0
        %1806 = vmatprep.subr.mxu0 0.0
        %1807 = vmatpush1.msra.mxu0 0.0
        %1808 = vmatprep.subr.mxu0 0.0
        %1809 = vmatpush1.msra.mxu0 0.0
        %1810 = vmatprep.subr.mxu0 0.0
        %1811 = vmatpush1.msra.mxu0 0.0
        %1812 = vmatprep.subr.mxu0 0.0
        %1813 = vmatpush1.msra.mxu0 0.0
        %1814 = vmatprep.subr.mxu0 0.0
        %1815 = vmatpush1.msra.mxu0 0.0
        %1816 = vmatprep.subr.mxu0 0.0
        %1817 = vmatpush1.msra.mxu0 0.0
        %1818 = vmatprep.subr.mxu0 0.0
        %1819 = vmatpush1.msra.mxu0 0.0
        %1820 = vmatprep.subr.mxu0 0.0
        %1821 = vmatpush1.msra.mxu0 0.0
        %1822 = vmatprep.subr.mxu0 0.0
        %1823 = vmatpush1.msra.mxu0 0.0
        %1824 = vmatprep.subr.mxu0 0.0
        %1825 = vmatpush1.msra.mxu0 0.0
        %1826 = vmatprep.subr.mxu0 0.0
        %1827 = vmatpush1.msra.mxu0 0.0
        %1828 = vmatprep.subr.mxu0 0.0
        %1829 = vmatpush1.msra.mxu0 0.0
        %1830 = vmatprep.subr.mxu0 0.0
        %1831 = vmatpush1.msra.mxu0 0.0
        %1832 = vmatprep.subr.mxu0 0.0
        %1833 = vmatpush1.msra.mxu0 0.0
        %1834 = vmatprep.subr.mxu0 0.0
        %1835 = vmatpush1.msra.mxu0 0.0
        %1836 = vmatprep.subr.mxu0 0.0
        %1837 = vmatpush1.msra.mxu0 0.0
        %1838 = vmatprep.subr.mxu0 0.0
        %1839 = vmatpush1.msra.mxu0 0.0
        %1840 = vmatprep.subr.mxu0 0.0
        %1841 = vmatpush1.msra.mxu0 0.0
        %1842 = vmatprep.subr.mxu0 0.0
        %1843 = vmatpush1.msra.mxu0 0.0
        %1844 = vmatprep.subr.mxu0 0.0
        %1845 = vmatpush1.msra.mxu0 0.0
        %1846 = vmatprep.subr.mxu0 0.0
        %1847 = vmatpush1.msra.mxu0 0.0
        %1848 = vmatprep.subr.mxu0 0.0
        %1849 = vmatpush1.msra.mxu0 0.0
        %1850 = vmatprep.subr.mxu0 0.0
        %1851 = vmatpush1.msra.mxu0 0.0
        %1852 = vmatprep.mubr.f32.mxu0 0.0
        %1853 = vmatmul.mubr.f32.gmra.mrb[0].mxu0 %v1783
        %v1854 = vpop.f32.mrb[0].mxu0
        %v1855 = vadd.f32 0.0, %v1854
        %v1856 = vpop.f32.mrb[0].mxu0
        %1857 = vmatprep.mubr.f32.mxu0 0.0
        %1858 = vmatmul.mubr.f32.gmra.mrb[0].mxu0 %v1786
        %v1859 = vpop.f32.mrb[0].mxu0
        %v1860 = vadd.f32 0.0, %v1859
        %v1861 = vpop.f32.mrb[0].mxu0
        %1862 = vdwg.mxu0
        %v1863 = vadd.f32 %v1586, %v1855
        %v1864 = vadd.f32 %v1587, %v1860
        %v1865 = vld [vmem:[%s9] sm:$0x1]
        %v1867 = vlaneseq
        %v1868 = vshrl.u32 %v1867, 7
        %v1869 = vsub.s32 0, %v1868
        %v1870 = vrot.slane %v1865, %v1869
        %v1872 = vadd.f32 %v1863, %v1870
        %v1873 = vadd.f32 %v1864, %v1870
        %1874 = vst.msk [vmem:[%s490] sm:$0xff] %vm679, %v1872
        %1875 = vst.msk [vmem:[%s490 + $0x8] sm:$0xff] %vm679, %v1873
        %s1876 = sand.u32 %s276, 1
        %s1877 = scalar_lea.sflag [#allocation6], %s1876
        %s1878 = sand.u32 %s276, 1
        %s1879 = smul.addr %s1878, 16
        %s1880 = scalar_lea.vmem [#allocation15], %s1879
        // Predicated region
        $region89: #{tpu_custom_call.1} parent=59 // pred_check
          %p1881 = pneg %p286
        $region90: #{tpu_custom_call.1} parent=59 // pred_check_branch
          %1883 = sbr.rel (%p1881) target = $region92
        $region91: #{tpu_custom_call.1} parent=59 // pred_region
          %s1884 = smul.u32 2, %s37
          %s1886 = ssub.s32 256, 256
          %1887 = vsyncadd %s1877, %s1886
          %s1888 = smul.addr %s36, 2
          %s1889 = sadd.s32 %s1884, %s1888
          %s1890 = smul.addr %s1889, 128
          %s1891 = scalar_lea.hbm %s10, %s1890
          %s1892 = sshll.u32 %s1880, 4
          %s1893 = int_to_ptr.vmem [resolvable:$true] %s1892
          %1898 = dma.vmem_to_hbm [thread:$0]  %s1893, 256, %s1891, %s1877, 128, 128, 8
        $region92: #{tpu_custom_call.1} parent=59 // pred_fallthru
          _
      $region60: #{tpu_custom_call.1} parent=5 // pred_fallthru
        _
      %p1899 = scmp.le.s32.totalorder 2, %s27
      // Predicated region
      $region93: #{tpu_custom_call.1} parent=5 // pred_check
        %p1900 = pneg %p1899
      $region94: #{tpu_custom_call.1} parent=5 // pred_check_branch
        %1902 = sbr.rel (%p1900) target = $region96
      $region95: #{tpu_custom_call.1} parent=5 // pred_region
        %s1903 = ssub.s32 %s27, 2
        // Predicated region
        $region97: #{tpu_custom_call.1} parent=95 // pred_check
          %p1904 = pneg %p292
        $region98: #{tpu_custom_call.1} parent=95 // pred_check_branch
          %1906 = sbr.rel (%p1904) target = $region100
        $region99: #{tpu_custom_call.1} parent=95 // pred_region
          %s1907 = sand.u32 %s277, 1
          %s1908 = scalar_lea.sflag [#allocation6], %s1907
          %s1909 = sand.u32 %s277, 1
          %s1910 = smul.addr %s1909, 16
          %s1911 = scalar_lea.vmem [#allocation15], %s1910
          %1912 = dma.done %s1908, 256
        $region100: #{tpu_custom_call.1} parent=95 // pred_fallthru
          _
      $region96: #{tpu_custom_call.1} parent=5 // pred_fallthru
        _
    $region6: #{tpu_custom_call.1} parent=1 // loop_footer
      %s31 = sadd.s32 1, %s27
    $region7: #{tpu_custom_call.1} parent=1 // loop_footer_branch
      %26 = sbr.rel target = $region3
    $region8: #{tpu_custom_call.1} parent=1 // loop_exit
      _
    %1913 = vsyncpa [#allocation5], 1
    %s1914 = scalar_lea.sflag [#allocation5], 1
    %1915 = vsyncpa %s1914, 1
    %1916 = vsyncpa [#allocation8], 1
    %s1917 = scalar_lea.sflag [#allocation8], 1
    %1918 = vsyncpa %s1917, 1
    %1919 = vsyncpa [#allocation11], 1
    %1920 = vsyncpa [#allocation14], 1
    %1921 = vsyncpa [#allocation6], 1
    %s1922 = scalar_lea.sflag [#allocation6], 1
    %1923 = vsyncpa %s1922, 1

</llo_original>
